<compile_context>
chip_gen: v6e
topology: v6e:2x2x1
jax: 0.10.0
libtpu: 0.0.40
codegen_flags: <defaults>
</compile_context>

<pallas_src>
import math

import jax
import jax.numpy as jnp
from jax import lax
from jax.experimental import pallas as pl
from jax.experimental.pallas import tpu as pltpu


def _round_up(x, m):
    return ((x + m - 1) // m) * m


def _gelu_exact_f32(x):
    # PyTorch nn.GELU() default: exact erf-based GELU (f32 VPU/EUP path).
    return 0.5 * x * (1.0 + lax.erf(x * (1.0 / math.sqrt(2.0))))


def feedforward_kernel(x_ref, w1_ref, b1_ref, w2_ref, b2_ref, o_ref, acc_ref):
    # x_ref:  (tm, dim)      bf16
    # w1_ref: (dim, tk_h)    bf16    b1_ref: (1, tk_h) f32
    # w2_ref: (tk_h, dim)    bf16    b2_ref: (1, dim)  f32
    # o_ref:  (tm, dim)      f32     acc_ref: (tm, dim) f32 scratch
    c = pl.program_id(1)

    @pl.when(c == 0)
    def _init():
        acc_ref[...] = jnp.zeros_like(acc_ref)

    # Matmul 1 (MXU, bf16 x bf16 -> f32) + bias + exact GELU (f32).
    h = jnp.dot(x_ref[...], w1_ref[...], preferred_element_type=jnp.float32)
    h = _gelu_exact_f32(h + b1_ref[...])

    # Dropout (eval mode) == identity.

    # Matmul 2 (MXU, bf16 x bf16 -> f32) accumulated into VMEM scratch.
    acc_ref[...] += jnp.dot(h.astype(jnp.bfloat16), w2_ref[...],
                            preferred_element_type=jnp.float32)

    @pl.when(c == pl.num_programs(1) - 1)
    def _finalize():
        # Fold the second bias into the final writeback (eval-mode dropout = id).
        o_ref[...] = (acc_ref[...] + b2_ref[...]).astype(o_ref.dtype)


def feedforward(x2d, w1, b1, w2, b2, *, tm=256, tk_h=512):
    """x2d: (M, dim) float32.  w1: (dim, hidden), b1: (hidden,),
       w2: (hidden, dim), b2: (dim,)."""
    M, dim = x2d.shape
    hidden = w1.shape[1]
    assert dim % 128 == 0 and hidden % 128 == 0, "feature dims must be lane-aligned"

    # --- Row (M) tiling: keep tm sublane-aligned and force >= 2 grid steps so the
    # activation tiles are double-buffered and the parallel axis can shard across
    # TensorCores on multi-core parts.
    tm_eff = min(tm, _round_up(M, 8))
    grid_m = pl.cdiv(M, tm_eff)
    if grid_m < 2:
        tm_eff = max(8, _round_up(pl.cdiv(M, 2), 8))
        grid_m = pl.cdiv(M, tm_eff)
    M_pad = grid_m * tm_eff
    if M_pad != M:
        x2d = jnp.pad(x2d, ((0, M_pad - M), (0, 0)))

    # --- Hidden tiling: stream (dim, tk) / (tk, dim) weight slabs from HBM.
    tk_eff = min(tk_h, hidden)
    while hidden % tk_eff != 0:
        tk_eff -= 128
    grid_h = hidden // tk_eff

    out_dtype = jnp.float32

    # bf16 operands for the MXU; f32 accumulation via preferred_element_type.
    x_bf = x2d.astype(jnp.bfloat16)
    w1_bf = w1.astype(jnp.bfloat16)
    w2_bf = w2.astype(jnp.bfloat16)
    b1_2d = b1.reshape(1, hidden).astype(jnp.float32)
    b2_2d = b2.reshape(1, dim).astype(jnp.float32)

    # Advisory cost estimate (2 matmuls + erf GELU).
    flops = 2 * 2 * M_pad * dim * hidden
    bytes_accessed = (M_pad * dim * 2            # x (bf16)
                      + dim * hidden * 2         # W1 (bf16)
                      + hidden * dim * 2         # W2 (bf16)
                      + M_pad * dim * 4          # out (f32)
                      + hidden * 4 + dim * 4)    # biases
    cost = pl.CostEstimate(flops=flops,
                           transcendentals=M_pad * hidden,
                           bytes_accessed=bytes_accessed)

    out = pl.pallas_call(
        feedforward_kernel,
        out_shape=jax.ShapeDtypeStruct((M_pad, dim), out_dtype),
        grid_spec=pltpu.PrefetchScalarGridSpec(
            num_scalar_prefetch=0,
            grid=(grid_m, grid_h),
            in_specs=[
                pl.BlockSpec((tm_eff, dim), lambda i, c: (i, 0)),     # x row tile
                pl.BlockSpec((dim, tk_eff), lambda i, c: (0, c)),     # W1 chunk
                pl.BlockSpec((1, tk_eff), lambda i, c: (0, c)),       # b1 chunk
                pl.BlockSpec((tk_eff, dim), lambda i, c: (c, 0)),     # W2 chunk
                pl.BlockSpec((1, dim), lambda i, c: (0, 0)),          # b2
            ],
            out_specs=pl.BlockSpec((tm_eff, dim), lambda i, c: (i, 0)),
            scratch_shapes=[pltpu.VMEM((tm_eff, dim), jnp.float32)],  # accumulator
        ),
        compiler_params=pltpu.CompilerParams(
            dimension_semantics=("parallel", "arbitrary"),
            vmem_limit_bytes=32 * 1024 * 1024),
        cost_estimate=cost,
    )(x_bf, w1_bf, b1_2d, w2_bf, b2_2d)

    return out[:M]


def feedforward_module(x, params):
    """x: (batch, seq, dim) -> (batch, seq, dim)."""
    B, S, D = x.shape
    x2d = x.reshape(B * S, D)
    out = feedforward(x2d, params["w1"], params["b1"],
                      params["w2"], params["b2"])
    return out.reshape(B, S, D)


def init_params(key, dim, hidden_dim):
    # Deterministic init mimicking nn.Linear defaults (uniform(-1/sqrt(fan_in), ...)).
    k1, k2, k3, k4 = jax.random.split(key, 4)
    bound1 = 1.0 / math.sqrt(dim)
    bound2 = 1.0 / math.sqrt(hidden_dim)
    # Store weights already transposed: (in, out)
    w1 = jax.random.uniform(k1, (dim, hidden_dim), jnp.float32, -bound1, bound1)
    b1 = jax.random.uniform(k2, (hidden_dim,), jnp.float32, -bound1, bound1)
    w2 = jax.random.uniform(k3, (hidden_dim, dim), jnp.float32, -bound2, bound2)
    b2 = jax.random.uniform(k4, (dim,), jnp.float32, -bound2, bound2)
    return {"w1": w1, "b1": b1, "w2": w2, "b2": b2}


def feedforward_ref(x, params):
    # Pure-JAX f32 reference (eval mode: dropout = identity).
    h = x @ params["w1"] + params["b1"]
    h = 0.5 * h * (1.0 + lax.erf(h / math.sqrt(2.0)))
    return h @ params["w2"] + params["b2"]


if __name__ == "__main__":
    key = jax.random.PRNGKey(0)
    kx, kp = jax.random.split(key)

    batch, seq = 2, 8
    dim, hidden_dim = 512, 1024   # module defaults; lane-aligned

    x = jax.random.normal(kx, (batch, seq, dim), dtype=jnp.float32)
    params = init_params(kp, dim, hidden_dim)

    out = feedforward_module(x, params)
    out = jax.block_until_ready(out)

    ref = feedforward_ref(x, params)
    assert out.shape == (batch, seq, dim)
    # bf16 operands with f32 accumulation -> looser tolerance vs the f32 reference.
    assert jnp.allclose(out, ref, atol=3e-2, rtol=3e-2), (
        "mismatch vs reference; max abs diff = %f" % float(jnp.max(jnp.abs(out - ref))))

    print("KERNEL_OK")
</pallas_src>

<mosaic_0001>
module attributes {stable_mosaic.version = 11 : i64} {
  func.func @feedforward_kernel(%arg0: i32, %arg1: i32, %arg2: memref<8x512xbf16, #tpu.memory_space<vmem>>, %arg3: memref<512x512xbf16, #tpu.memory_space<vmem>>, %arg4: memref<1x512xf32, #tpu.memory_space<vmem>>, %arg5: memref<512x512xbf16, #tpu.memory_space<vmem>>, %arg6: memref<1x512xf32, #tpu.memory_space<vmem>>, %arg7: memref<8x512xf32, #tpu.memory_space<vmem>>, %arg8: memref<8x512xf32, #tpu.memory_space<vmem>>) attributes {dimension_semantics = [#tpu.dimension_semantics<parallel>, #tpu.dimension_semantics<arbitrary>], iteration_bounds = array<i64: 2, 2>, scalar_prefetch = 0 : i64, scratch_operands = 1 : i64, tpu.core_type = #tpu.core_type<tc>, window_params = [{transform_indices = @transform_0, window_bounds = array<i64: 8, 512>}, {transform_indices = @transform_1, window_bounds = array<i64: 512, 512>}, {transform_indices = @transform_2, window_bounds = array<i64: 1, 512>}, {transform_indices = @transform_3, window_bounds = array<i64: 512, 512>}, {pipeline_mode = #tpu.pipeline_mode<synchronous>, transform_indices = @transform_4, window_bounds = array<i64: 1, 512>}, {transform_indices = @transform_5, window_bounds = array<i64: 8, 512>}]} {
    %c0_i32 = arith.constant 0 : i32
    %0 = arith.cmpi eq, %arg1, %c0_i32 : i32
    %1 = arith.extui %0 : i1 to i32
    %c0_i32_0 = arith.constant 0 : i32
    %2 = arith.cmpi ne, %1, %c0_i32_0 : i32
    scf.if %2 {
      %cst_17 = arith.constant 0.000000e+00 : f32
      %26 = vector.broadcast %cst_17 : f32 to vector<8x512xf32>
      %c0_18 = arith.constant 0 : index
      %c0_19 = arith.constant 0 : index
      %27 = vector.load %arg8[%c0_18, %c0_19] : memref<8x512xf32, #tpu.memory_space<vmem>>, vector<8x512xf32>
      tpu.vector_store %arg8[%c0_18, %c0_19], %26 {strides = array<i32>} : memref<8x512xf32, #tpu.memory_space<vmem>>, vector<8x512xf32>,
    } else {
    }
    %c0 = arith.constant 0 : index
    %c0_1 = arith.constant 0 : index
    %3 = vector.load %arg2[%c0, %c0_1] : memref<8x512xbf16, #tpu.memory_space<vmem>>, vector<8x512xbf16>
    %c0_2 = arith.constant 0 : index
    %c0_3 = arith.constant 0 : index
    %4 = vector.load %arg3[%c0_2, %c0_3] : memref<512x512xbf16, #tpu.memory_space<vmem>>, vector<512x512xbf16>
    %cst = arith.constant dense<0.000000e+00> : vector<8x512xf32>
    %5 = tpu.matmul %3, %4, %cst {dimension_numbers = #tpu.dot_dimension_numbers<[1], [0], [0], [1], [0, 0, 1, 1], [], []>} : vector<8x512xbf16>, vector<512x512xbf16>, vector<8x512xf32> -> vector<8x512xf32>
    %c0_4 = arith.constant 0 : index
    %c0_5 = arith.constant 0 : index
    %6 = vector.load %arg4[%c0_4, %c0_5] : memref<1x512xf32, #tpu.memory_space<vmem>>, vector<1x512xf32>
    %7 = vector.broadcast %6 : vector<1x512xf32> to vector<8x512xf32>
    %8 = arith.addf %5, %7 : vector<8x512xf32>
    %cst_6 = arith.constant 5.000000e-01 : f32
    %9 = vector.broadcast %cst_6 : f32 to vector<8x512xf32>
    %10 = arith.mulf %9, %8 : vector<8x512xf32>
    %cst_7 = arith.constant 0.707106769 : f32
    %11 = vector.broadcast %cst_7 : f32 to vector<8x512xf32>
    %12 = arith.mulf %8, %11 : vector<8x512xf32>
    %13 = math.erf %12 : vector<8x512xf32>
    %cst_8 = arith.constant 1.000000e+00 : f32
    %14 = vector.broadcast %cst_8 : f32 to vector<8x512xf32>
    %15 = arith.addf %14, %13 : vector<8x512xf32>
    %16 = arith.mulf %10, %15 : vector<8x512xf32>
    %c0_9 = arith.constant 0 : index
    %c0_10 = arith.constant 0 : index
    %17 = vector.load %arg8[%c0_9, %c0_10] : memref<8x512xf32, #tpu.memory_space<vmem>>, vector<8x512xf32>
    %18 = arith.truncf %16 : vector<8x512xf32> to vector<8x512xbf16>
    %c0_11 = arith.constant 0 : index
    %c0_12 = arith.constant 0 : index
    %19 = vector.load %arg5[%c0_11, %c0_12] : memref<512x512xbf16, #tpu.memory_space<vmem>>, vector<512x512xbf16>
    %cst_13 = arith.constant dense<0.000000e+00> : vector<8x512xf32>
    %20 = tpu.matmul %18, %19, %cst_13 {dimension_numbers = #tpu.dot_dimension_numbers<[1], [0], [0], [1], [0, 0, 1, 1], [], []>} : vector<8x512xbf16>, vector<512x512xbf16>, vector<8x512xf32> -> vector<8x512xf32>
    %21 = arith.addf %17, %20 : vector<8x512xf32>
    %c0_14 = arith.constant 0 : index
    %c0_15 = arith.constant 0 : index
    %22 = vector.load %arg8[%c0_14, %c0_15] : memref<8x512xf32, #tpu.memory_space<vmem>>, vector<8x512xf32>
    tpu.vector_store %arg8[%c0_14, %c0_15], %21 {strides = array<i32>} : memref<8x512xf32, #tpu.memory_space<vmem>>, vector<8x512xf32>,
    %c1_i32 = arith.constant 1 : i32
    %23 = arith.cmpi eq, %arg1, %c1_i32 : i32
    %24 = arith.extui %23 : i1 to i32
    %c0_i32_16 = arith.constant 0 : i32
    %25 = arith.cmpi ne, %24, %c0_i32_16 : i32
    scf.if %25 {
      %c0_17 = arith.constant 0 : index
      %c0_18 = arith.constant 0 : index
      %26 = vector.load %arg8[%c0_17, %c0_18] : memref<8x512xf32, #tpu.memory_space<vmem>>, vector<8x512xf32>
      %c0_19 = arith.constant 0 : index
      %c0_20 = arith.constant 0 : index
      %27 = vector.load %arg6[%c0_19, %c0_20] : memref<1x512xf32, #tpu.memory_space<vmem>>, vector<1x512xf32>
      %28 = vector.broadcast %27 : vector<1x512xf32> to vector<8x512xf32>
      %29 = arith.addf %26, %28 : vector<8x512xf32>
      %c0_21 = arith.constant 0 : index
      %c0_22 = arith.constant 0 : index
      %30 = vector.load %arg7[%c0_21, %c0_22] : memref<8x512xf32, #tpu.memory_space<vmem>>, vector<8x512xf32>
      tpu.vector_store %arg7[%c0_21, %c0_22], %29 {strides = array<i32>} : memref<8x512xf32, #tpu.memory_space<vmem>>, vector<8x512xf32>,
    } else {
    }
    return
  }
  func.func @transform_0(%arg0: i32, %arg1: i32) -> (i32, i32) {
    %c0_i32 = arith.constant 0 : i32
    %c0_i32_0 = arith.constant 0 : i32
    return %arg0, %c0_i32 : i32, i32
  }
  func.func @transform_1(%arg0: i32, %arg1: i32) -> (i32, i32) {
    %c0_i32 = arith.constant 0 : i32
    %c0_i32_0 = arith.constant 0 : i32
    return %c0_i32, %arg1 : i32, i32
  }
  func.func @transform_2(%arg0: i32, %arg1: i32) -> (i32, i32) {
    %c0_i32 = arith.constant 0 : i32
    %c0_i32_0 = arith.constant 0 : i32
    return %c0_i32, %arg1 : i32, i32
  }
  func.func @transform_3(%arg0: i32, %arg1: i32) -> (i32, i32) {
    %c0_i32 = arith.constant 0 : i32
    %c0_i32_0 = arith.constant 0 : i32
    return %arg1, %c0_i32 : i32, i32
  }
  func.func @transform_4(%arg0: i32, %arg1: i32) -> (i32, i32) {
    %c0_i32 = arith.constant 0 : i32
    %c0_i32_0 = arith.constant 0 : i32
    %c0_i32_1 = arith.constant 0 : i32
    return %c0_i32, %c0_i32_0 : i32, i32
  }
  func.func @transform_5(%arg0: i32, %arg1: i32) -> (i32, i32) {
    %c0_i32 = arith.constant 0 : i32
    %c0_i32_0 = arith.constant 0 : i32
    return %arg0, %c0_i32 : i32, i32
  }
}

</mosaic_0001>

<llo_original>
// kernel: tpu_custom_call.1
$region0: #{tpu_custom_call.1}
  #allocation0 [shape = 'u32[]', space=smem, size = 0x4, offset = 0x4, fixed_abs, tag = 'smem constant byte address 0x4 - core index']
  #allocation1 [shape = 'u32[144,128]{1,0:T(1,128)}', space=vmem, size = 0x12000, scoped, tag = 'internal scratch']
  #allocation2 [shape = 'f32[8,512]{1,0:T(8,128)}', space=vmem, size = 0x4000, scoped, tag = 'scratch operand']
  %s0 = inlined_call_operand.hbm [shape: bf16[16,512], index: 0, kind: input, shape index: {}]
  %s1 = inlined_call_operand.hbm [shape: bf16[512,1024], index: 1, kind: input, shape index: {}]
  %s2 = inlined_call_operand.hbm [shape: f32[1,1024], index: 2, kind: input, shape index: {}]
  %s3 = inlined_call_operand.hbm [shape: bf16[1024,512], index: 3, kind: input, shape index: {}]
  %s4 = inlined_call_operand.vmem [shape: f32[1,512], index: 4, kind: input, shape index: {}]
  %s5 = inlined_call_operand.hbm [shape: f32[16,512], index: 5, kind: output, shape index: {}]
  %s6 = sld [smem:[#allocation0]]
  $region77: #{tpu_custom_call.1} parent=0
    _
  %s8 = ssub.s32 1, %s6
  %s9 = scalar_select 0, %s8, %s6
  $region1: #{tpu_custom_call.1} parent=0
    #allocation3 [shape = 'u8[16384]{0}', space=vmem, size = 0x4000, scoped, tag = 'input window, operand 0']
    #allocation4 [shape = 's32[2]{0}', space=sflag, size = 0x8, scoped, tag = 'scoped memory for tpu_custom_call.1']
    #allocation5 [shape = 's32[2]{0}', space=sflag, size = 0x8, scoped, tag = 'scoped memory for tpu_custom_call.1']
    #allocation6 [shape = 'u8[1048576]{0}', space=vmem, size = 0x100000, scoped, tag = 'input window, operand 1']
    #allocation7 [shape = 's32[2]{0}', space=sflag, size = 0x8, scoped, tag = 'scoped memory for tpu_custom_call.1']
    #allocation8 [shape = 'u8[4096]{0}', space=vmem, size = 0x1000, scoped, tag = 'input window, operand 2']
    #allocation9 [shape = 'u8[1048576]{0}', space=vmem, size = 0x100000, scoped, tag = 'input window, operand 3']
    #allocation10 [shape = 's32[2]{0}', space=sflag, size = 0x8, scoped, tag = 'scoped memory for tpu_custom_call.1']
    #allocation11 [shape = 'u8[32768]{0}', space=vmem, size = 0x8000, scoped, tag = 'output window, operand 0']
    %10 = vsyncpa [#allocation4], 0
    %s11 = scalar_lea.sflag [#allocation4], 1
    %12 = vsyncpa %s11, 0
    %13 = vsyncpa [#allocation7], 0
    %s14 = scalar_lea.sflag [#allocation7], 1
    %15 = vsyncpa %s14, 0
    %16 = vsyncpa [#allocation10], 0
    %s17 = scalar_lea.sflag [#allocation10], 1
    %18 = vsyncpa %s17, 0
    %19 = vsyncpa [#allocation5], 0
    %s20 = scalar_lea.sflag [#allocation5], 1
    %21 = vsyncpa %s20, 0
    loop: start=0, step=1, limit=6
    $region2: #{tpu_custom_call.1} parent=1 // loop_pre_header
      _
    $region3: #{tpu_custom_call.1} parent=1 // loop_header
      %s23 = sphi 0, %s27
      %p24 = scmp.ge.s32.totalorder %s23, 6
      %s30 = sphi 0, %s42
      %s31 = sphi 0, %s38
      %s32 = sphi 0, %s30
      %s33 = sphi 0, %s31
      %s34 = sphi 0, %s32
      %s35 = sphi 0, %s33
      %s45 = sphi 0, %s47
      %s48 = sphi 0, %s45
      %s49 = sphi 0, %s48
      %s65 = sphi 0, %s49
      %s71 = sphi 0, %s73
      %s74 = sphi 0, %s71
      %s75 = sphi 0, %s74
      %s91 = sphi 0, %s75
      %s97 = sphi 0, %s99
      %s100 = sphi 0, %s97
      %s101 = sphi 0, %s100
      %s117 = sphi 0, %s101
      %s123 = sphi 0, %s125
      %s126 = sphi 0, %s123
      %s127 = sphi 0, %s126
      %s143 = sphi 0, %s127
      %s147 = sphi 0, %s147
      %s149 = sphi 0, %s147
      %s150 = sphi 0, %s149
      %s164 = sphi 0, %s150
      %s170 = sphi 0, %s172
      %s173 = sphi 0, %s170
      %s174 = sphi 0, %s173
      %s190 = sphi 0, %s174
    $region4: #{tpu_custom_call.1} parent=1 // loop_header_branch
      %26 = sbr.rel (%p24) target = $region8
    $region5: #{tpu_custom_call.1} parent=1 // loop_body
      %s28 = ssub.s32 %s23, 1
      %s29 = ssub.s32 %s23, 2
      %s36 = sadd.s32 1, %s31
      %p37 = scmp.ge.s32.totalorder %s36, 2
      %s38 = scalar_select %p37, 0, %s36
      %s39 = sadd.s32 1, %s30
      %s40 = scalar_select %p37, %s39, %s30
      %p41 = scmp.ge.s32.totalorder %s40, 2
      %s42 = scalar_select %p41, 0, %s40
      %s43 = ssub.s32 %s30, %s42
      %p44 = scmp.eq.s32.totalorder %s43, 0
      %s46 = sadd.s32 %s45, 1
      %s47 = scalar_select %p44, %s45, %s46
      %p50 = pneg %p44
      %p51 = scmp.eq.s32.totalorder %s23, 3
      %p52 = por %p50, %p51
      %p53 = scmp.ne.s32.totalorder %s45, %s48
      %p54 = scmp.eq.s32.totalorder %s23, 0
      %p55 = por %p53, %p54
      %p56 = scmp.ne.s32.totalorder %s45, %s48
      %p57 = scmp.eq.s32.totalorder %s28, 3
      %p58 = por %p56, %p57
      %p59 = scmp.ne.s32.totalorder %s48, %s49
      %p60 = scmp.eq.s32.totalorder %s28, 0
      %p61 = por %p59, %p60
      %p62 = scmp.ne.s32.totalorder %s48, %s49
      %p63 = scmp.eq.s32.totalorder %s29, 3
      %p64 = por %p62, %p63
      %p66 = scmp.ne.s32.totalorder %s49, %s65
      %p67 = scmp.eq.s32.totalorder %s29, 0
      %p68 = por %p66, %p67
      %s69 = ssub.s32 %s31, %s38
      %p70 = scmp.eq.s32.totalorder %s69, 0
      %s72 = sadd.s32 %s71, 1
      %s73 = scalar_select %p70, %s71, %s72
      %p76 = pneg %p70
      %p77 = scmp.eq.s32.totalorder %s23, 3
      %p78 = por %p76, %p77
      %p79 = scmp.ne.s32.totalorder %s71, %s74
      %p80 = scmp.eq.s32.totalorder %s23, 0
      %p81 = por %p79, %p80
      %p82 = scmp.ne.s32.totalorder %s71, %s74
      %p83 = scmp.eq.s32.totalorder %s28, 3
      %p84 = por %p82, %p83
      %p85 = scmp.ne.s32.totalorder %s74, %s75
      %p86 = scmp.eq.s32.totalorder %s28, 0
      %p87 = por %p85, %p86
      %p88 = scmp.ne.s32.totalorder %s74, %s75
      %p89 = scmp.eq.s32.totalorder %s29, 3
      %p90 = por %p88, %p89
      %p92 = scmp.ne.s32.totalorder %s75, %s91
      %p93 = scmp.eq.s32.totalorder %s29, 0
      %p94 = por %p92, %p93
      %s95 = ssub.s32 %s31, %s38
      %p96 = scmp.eq.s32.totalorder %s95, 0
      %s98 = sadd.s32 %s97, 1
      %s99 = scalar_select %p96, %s97, %s98
      %p102 = pneg %p96
      %p103 = scmp.eq.s32.totalorder %s23, 3
      %p104 = por %p102, %p103
      %p105 = scmp.ne.s32.totalorder %s97, %s100
      %p106 = scmp.eq.s32.totalorder %s23, 0
      %p107 = por %p105, %p106
      %p108 = scmp.ne.s32.totalorder %s97, %s100
      %p109 = scmp.eq.s32.totalorder %s28, 3
      %p110 = por %p108, %p109
      %p111 = scmp.ne.s32.totalorder %s100, %s101
      %p112 = scmp.eq.s32.totalorder %s28, 0
      %p113 = por %p111, %p112
      %p114 = scmp.ne.s32.totalorder %s100, %s101
      %p115 = scmp.eq.s32.totalorder %s29, 3
      %p116 = por %p114, %p115
      %p118 = scmp.ne.s32.totalorder %s101, %s117
      %p119 = scmp.eq.s32.totalorder %s29, 0
      %p120 = por %p118, %p119
      %s121 = ssub.s32 %s31, %s38
      %p122 = scmp.eq.s32.totalorder %s121, 0
      %s124 = sadd.s32 %s123, 1
      %s125 = scalar_select %p122, %s123, %s124
      %p128 = pneg %p122
      %p129 = scmp.eq.s32.totalorder %s23, 3
      %p130 = por %p128, %p129
      %p131 = scmp.ne.s32.totalorder %s123, %s126
      %p132 = scmp.eq.s32.totalorder %s23, 0
      %p133 = por %p131, %p132
      %p134 = scmp.ne.s32.totalorder %s123, %s126
      %p135 = scmp.eq.s32.totalorder %s28, 3
      %p136 = por %p134, %p135
      %p137 = scmp.ne.s32.totalorder %s126, %s127
      %p138 = scmp.eq.s32.totalorder %s28, 0
      %p139 = por %p137, %p138
      %p140 = scmp.ne.s32.totalorder %s126, %s127
      %p141 = scmp.eq.s32.totalorder %s29, 3
      %p142 = por %p140, %p141
      %p144 = scmp.ne.s32.totalorder %s127, %s143
      %p145 = scmp.eq.s32.totalorder %s29, 0
      %p146 = por %p144, %p145
      %s148 = sadd.s32 %s147, 1
      %p151 = scmp.eq.s32.totalorder %s23, 3
      %p152 = scmp.ne.s32.totalorder %s147, %s149
      %p153 = scmp.eq.s32.totalorder %s23, 0
      %p154 = por %p152, %p153
      %p155 = scmp.ne.s32.totalorder %s147, %s149
      %p156 = scmp.eq.s32.totalorder %s28, 3
      %p157 = por %p155, %p156
      %p158 = scmp.ne.s32.totalorder %s149, %s150
      %p159 = scmp.eq.s32.totalorder %s28, 0
      %p160 = por %p158, %p159
      %p161 = scmp.ne.s32.totalorder %s149, %s150
      %p162 = scmp.eq.s32.totalorder %s29, 3
      %p163 = por %p161, %p162
      %p165 = scmp.ne.s32.totalorder %s150, %s164
      %p166 = scmp.eq.s32.totalorder %s29, 0
      %p167 = por %p165, %p166
      %s168 = ssub.s32 %s30, %s42
      %p169 = scmp.eq.s32.totalorder %s168, 0
      %s171 = sadd.s32 %s170, 1
      %s172 = scalar_select %p169, %s170, %s171
      %p175 = pneg %p169
      %p176 = scmp.eq.s32.totalorder %s23, 3
      %p177 = por %p175, %p176
      %p178 = scmp.ne.s32.totalorder %s170, %s173
      %p179 = scmp.eq.s32.totalorder %s23, 0
      %p180 = por %p178, %p179
      %p181 = scmp.ne.s32.totalorder %s170, %s173
      %p182 = scmp.eq.s32.totalorder %s28, 3
      %p183 = por %p181, %p182
      %p184 = scmp.ne.s32.totalorder %s173, %s174
      %p185 = scmp.eq.s32.totalorder %s28, 0
      %p186 = por %p184, %p185
      %p187 = scmp.ne.s32.totalorder %s173, %s174
      %p188 = scmp.eq.s32.totalorder %s29, 3
      %p189 = por %p187, %p188
      %p191 = scmp.ne.s32.totalorder %s174, %s190
      %p192 = scmp.eq.s32.totalorder %s29, 0
      %p193 = por %p191, %p192
      %p194 = scmp.le.s32.totalorder 1, %s23
      %p195 = scmp.lt.s32.totalorder %s23, 5
      %p196 = pnand %p194, %p195
      %p197 = pneg %p196
      // Predicated region
      $region9: #{tpu_custom_call.1} parent=5 // pred_check
        _
      $region10: #{tpu_custom_call.1} parent=5 // pred_check_branch
        %199 = sbr.rel (%p196) target = $region12
      $region11: #{tpu_custom_call.1} parent=5 // pred_region
        %s200 = ssub.s32 %s23, 1
        // Predicated region
        $region13: #{tpu_custom_call.1} parent=11 // pred_check
          %p201 = pneg %p160
        $region14: #{tpu_custom_call.1} parent=11 // pred_check_branch
          %203 = sbr.rel (%p201) target = $region16
        $region15: #{tpu_custom_call.1} parent=11 // pred_region
          _
        $region16: #{tpu_custom_call.1} parent=11 // pred_fallthru
          _
      $region12: #{tpu_custom_call.1} parent=5 // pred_fallthru
        _
      %p204 = scmp.lt.s32.totalorder %s23, 4
      // Predicated region
      $region17: #{tpu_custom_call.1} parent=5 // pred_check
        %p205 = pneg %p204
      $region18: #{tpu_custom_call.1} parent=5 // pred_check_branch
        %207 = sbr.rel (%p205) target = $region20
      $region19: #{tpu_custom_call.1} parent=5 // pred_region
        // Predicated region
        $region21: #{tpu_custom_call.1} parent=19 // pred_check
          %p208 = pneg %p55
        $region22: #{tpu_custom_call.1} parent=19 // pred_check_branch
          %210 = sbr.rel (%p208) target = $region24
        $region23: #{tpu_custom_call.1} parent=19 // pred_region
          %s211 = sand.u32 %s45, 1
          %s212 = scalar_lea.sflag [#allocation4], %s211
          %s213 = sand.u32 %s45, 1
          %s214 = smul.addr %s213, 16
          %s215 = scalar_lea.vmem [#allocation3], %s214
          %s217 = ssub.s32 256, 256
          %218 = vsyncadd %s212, %s217
          %s219 = smul.addr %s30, 4
          %s220 = smul.addr %s219, 64
          %s221 = scalar_lea.hbm %s0, %s220
          %s223 = sshll.u32 %s215, 4
          %s224 = int_to_ptr.vmem [resolvable:$true] %s223
          %226 = dma.hbm_to_vmem [thread:$0]  %s221, 256, %s224, %s212
        $region24: #{tpu_custom_call.1} parent=19 // pred_fallthru
          _
        // Predicated region
        $region25: #{tpu_custom_call.1} parent=19 // pred_check
          %p227 = pneg %p81
        $region26: #{tpu_custom_call.1} parent=19 // pred_check_branch
          %229 = sbr.rel (%p227) target = $region28
        $region27: #{tpu_custom_call.1} parent=19 // pred_region
          %s230 = sand.u32 %s23, 1
          %s231 = scalar_lea.sflag [#allocation7], %s230
          %s232 = sand.u32 %s71, 1
          %s233 = smul.addr %s232, 1024
          %s234 = scalar_lea.vmem [#allocation6], %s233
          %s235 = smul.u32 4, %s31
          %s237 = ssub.s32 16384, 16384
          %238 = vsyncadd %s231, %s237
          %s239 = smul.addr %s235, 64
          %s240 = scalar_lea.hbm %s1, %s239
          %s241 = sshll.u32 %s234, 4
          %s242 = int_to_ptr.vmem [resolvable:$true] %s241
          %247 = dma.hbm_to_vmem [thread:$0]  %s240, 16384, %s242, %s231, 512, 256, 16
        $region28: #{tpu_custom_call.1} parent=19 // pred_fallthru
          _
        // Predicated region
        $region29: #{tpu_custom_call.1} parent=19 // pred_check
          %p248 = pneg %p107
        $region30: #{tpu_custom_call.1} parent=19 // pred_check_branch
          %250 = sbr.rel (%p248) target = $region32
        $region31: #{tpu_custom_call.1} parent=19 // pred_region
          %s251 = sand.u32 %s23, 1
          %s252 = scalar_lea.sflag [#allocation7], %s251
          %s253 = sand.u32 %s97, 1
          %s254 = smul.addr %s253, 4
          %s255 = scalar_lea.vmem [#allocation8], %s254
          %s256 = smul.u32 4, %s31
          %s258 = ssub.s32 64, 64
          %259 = vsyncadd %s252, %s258
          %s260 = smul.addr %s256, 16
          %s261 = scalar_lea.hbm %s2, %s260
          %s263 = sshll.u32 %s255, 4
          %s264 = int_to_ptr.vmem [resolvable:$true] %s263
          %266 = dma.hbm_to_vmem [thread:$0]  %s261, 64, %s264, %s252
        $region32: #{tpu_custom_call.1} parent=19 // pred_fallthru
          _
        // Predicated region
        $region33: #{tpu_custom_call.1} parent=19 // pred_check
          %p267 = pneg %p133
        $region34: #{tpu_custom_call.1} parent=19 // pred_check_branch
          %269 = sbr.rel (%p267) target = $region36
        $region35: #{tpu_custom_call.1} parent=19 // pred_region
          %s270 = sand.u32 %s123, 1
          %s271 = scalar_lea.sflag [#allocation10], %s270
          %s272 = sand.u32 %s123, 1
          %s273 = smul.addr %s272, 1024
          %s274 = scalar_lea.vmem [#allocation9], %s273
          %s275 = smul.u32 64, %s31
          %s277 = ssub.s32 16384, 16384
          %278 = vsyncadd %s271, %s277
          %s279 = smul.addr %s275, 4
          %s280 = smul.addr %s279, 64
          %s281 = scalar_lea.hbm %s3, %s280
          %s282 = sshll.u32 %s274, 4
          %s283 = int_to_ptr.vmem [resolvable:$true] %s282
          %288 = dma.hbm_to_vmem [thread:$0]  %s281, 16384, %s283, %s271, 256, 256, 16
        $region36: #{tpu_custom_call.1} parent=19 // pred_fallthru
          _
      $region20: #{tpu_custom_call.1} parent=5 // pred_fallthru
        _
      %p289 = scmp.le.s32.totalorder 1, %s23
      %p290 = scmp.lt.s32.totalorder %s23, 5
      %p291 = pnand %p289, %p290
      %p292 = pneg %p291
      // Predicated region
      $region37: #{tpu_custom_call.1} parent=5 // pred_check
        _
      $region38: #{tpu_custom_call.1} parent=5 // pred_check_branch
        %294 = sbr.rel (%p291) target = $region40
      $region39: #{tpu_custom_call.1} parent=5 // pred_region
        %s295 = ssub.s32 %s23, 1
        %s296 = sand.u32 %s48, 1
        %s297 = scalar_lea.sflag [#allocation4], %s296
        %s298 = sand.u32 %s48, 1
        %s299 = smul.addr %s298, 16
        %s300 = scalar_lea.vmem [#allocation3], %s299
        // Predicated region
        $region41: #{tpu_custom_call.1} parent=39 // pred_check
          %p301 = pneg %p61
        $region42: #{tpu_custom_call.1} parent=39 // pred_check_branch
          %303 = sbr.rel (%p301) target = $region44
        $region43: #{tpu_custom_call.1} parent=39 // pred_region
          %304 = dma.done %s297, 256
        $region44: #{tpu_custom_call.1} parent=39 // pred_fallthru
          _
        %s305 = sand.u32 %s28, 1
        %s306 = scalar_lea.sflag [#allocation7], %s305
        %s307 = sand.u32 %s74, 1
        %s308 = smul.addr %s307, 1024
        %s309 = scalar_lea.vmem [#allocation6], %s308
        // Predicated region
        $region45: #{tpu_custom_call.1} parent=39 // pred_check
          %p310 = pneg %p87
        $region46: #{tpu_custom_call.1} parent=39 // pred_check_branch
          %312 = sbr.rel (%p310) target = $region48
        $region47: #{tpu_custom_call.1} parent=39 // pred_region
          %313 = dma.done %s306, 16384
        $region48: #{tpu_custom_call.1} parent=39 // pred_fallthru
          _
        %s314 = sand.u32 %s28, 1
        %s315 = scalar_lea.sflag [#allocation7], %s314
        %s316 = sand.u32 %s100, 1
        %s317 = smul.addr %s316, 4
        %s318 = scalar_lea.vmem [#allocation8], %s317
        // Predicated region
        $region49: #{tpu_custom_call.1} parent=39 // pred_check
          %p319 = pneg %p113
        $region50: #{tpu_custom_call.1} parent=39 // pred_check_branch
          %321 = sbr.rel (%p319) target = $region52
        $region51: #{tpu_custom_call.1} parent=39 // pred_region
          %322 = dma.done %s315, 64
        $region52: #{tpu_custom_call.1} parent=39 // pred_fallthru
          _
        %s323 = sand.u32 %s126, 1
        %s324 = scalar_lea.sflag [#allocation10], %s323
        %s325 = sand.u32 %s126, 1
        %s326 = smul.addr %s325, 1024
        %s327 = scalar_lea.vmem [#allocation9], %s326
        // Predicated region
        $region53: #{tpu_custom_call.1} parent=39 // pred_check
          %p328 = pneg %p139
        $region54: #{tpu_custom_call.1} parent=39 // pred_check_branch
          %330 = sbr.rel (%p328) target = $region56
        $region55: #{tpu_custom_call.1} parent=39 // pred_region
          %331 = dma.done %s324, 16384
        $region56: #{tpu_custom_call.1} parent=39 // pred_fallthru
          _
        %s332 = sand.u32 %s48, 1
        %s333 = scalar_lea.sflag [#allocation4], %s332
        %s334 = sand.u32 %s48, 1
        %s335 = smul.addr %s334, 16
        %s336 = scalar_lea.vmem [#allocation3], %s335
        %p337 = pneg %p61
        %p338 = pneg %p58
        %s339 = sand.u32 %s28, 1
        %s340 = scalar_lea.sflag [#allocation7], %s339
        %s341 = sand.u32 %s74, 1
        %s342 = smul.addr %s341, 1024
        %s343 = scalar_lea.vmem [#allocation6], %s342
        %p344 = pneg %p87
        %p345 = pneg %p84
        %s346 = sand.u32 %s28, 1
        %s347 = scalar_lea.sflag [#allocation7], %s346
        %s348 = sand.u32 %s100, 1
        %s349 = smul.addr %s348, 4
        %s350 = scalar_lea.vmem [#allocation8], %s349
        %p351 = pneg %p113
        %p352 = pneg %p110
        %s353 = sand.u32 %s126, 1
        %s354 = scalar_lea.sflag [#allocation10], %s353
        %s355 = sand.u32 %s126, 1
        %s356 = smul.addr %s355, 1024
        %s357 = scalar_lea.vmem [#allocation9], %s356
        %p358 = pneg %p139
        %p359 = pneg %p136
        %p360 = pneg %p160
        %p361 = pneg %p157
        %p362 = pneg %p186
        %p363 = pneg %p183
        %s364 = sand.u32 %s173, 1
        %s365 = scalar_lea.sflag [#allocation5], %s364
        %s366 = sand.u32 %s173, 1
        %s367 = smul.addr %s366, 32
        %s368 = scalar_lea.vmem [#allocation11], %s367
        %s369 = smul.u32 4, %s33
        %s370 = smul.u32 4, %s33
        %s371 = smul.u32 64, %s33
        %p372 = scmp.eq.s32.totalorder %s33, 0
        // Predicated region
        $region57: #{tpu_custom_call.1} parent=39 // pred_check
          %p373 = pneg %p372
        $region58: #{tpu_custom_call.1} parent=39 // pred_check_branch
          %375 = sbr.rel (%p373) target = $region60
        $region59: #{tpu_custom_call.1} parent=39 // pred_region
          %376 = vst [vmem:[#allocation2] sm:$0xff] 0.0
          %377 = vst [vmem:[#allocation2 + $0x8] sm:$0xff] 0.0
          %378 = vst [vmem:[#allocation2 + $0x10] sm:$0xff] 0.0
          %379 = vst [vmem:[#allocation2 + $0x18] sm:$0xff] 0.0
        $region60: #{tpu_custom_call.1} parent=39 // pred_fallthru
          _
        %v380 = vld [vmem:[%s300] sm:$0xff]
        %v381 = vld [vmem:[%s300 + $0x8] sm:$0xff]
        %v382 = vld [vmem:[%s309] sm:$0xff]
        %v383 = vld [vmem:[%s309 + $0x8] sm:$0xff]
        %v384 = vld [vmem:[%s309 + $0x10] sm:$0xff]
        %v385 = vld [vmem:[%s309 + $0x18] sm:$0xff]
        %v386 = vld [vmem:[%s309 + $0x20] sm:$0xff]
        %v387 = vld [vmem:[%s309 + $0x28] sm:$0xff]
        %v388 = vld [vmem:[%s309 + $0x30] sm:$0xff]
        %v389 = vld [vmem:[%s309 + $0x38] sm:$0xff]
        %v390 = vld [vmem:[%s309 + $0x40] sm:$0xff]
        %v391 = vld [vmem:[%s309 + $0x48] sm:$0xff]
        %v392 = vld [vmem:[%s309 + $0x50] sm:$0xff]
        %v393 = vld [vmem:[%s309 + $0x58] sm:$0xff]
        %v394 = vld [vmem:[%s309 + $0x60] sm:$0xff]
        %v395 = vld [vmem:[%s309 + $0x68] sm:$0xff]
        %v396 = vld [vmem:[%s309 + $0x70] sm:$0xff]
        %v397 = vld [vmem:[%s309 + $0x78] sm:$0xff]
        %v398 = vld [vmem:[%s309 + $0x80] sm:$0xff]
        %v399 = vld [vmem:[%s309 + $0x88] sm:$0xff]
        %v400 = vld [vmem:[%s309 + $0x90] sm:$0xff]
        %v401 = vld [vmem:[%s309 + $0x98] sm:$0xff]
        %v402 = vld [vmem:[%s309 + $0xa0] sm:$0xff]
        %v403 = vld [vmem:[%s309 + $0xa8] sm:$0xff]
        %v404 = vld [vmem:[%s309 + $0xb0] sm:$0xff]
        %v405 = vld [vmem:[%s309 + $0xb8] sm:$0xff]
        %v406 = vld [vmem:[%s309 + $0xc0] sm:$0xff]
        %v407 = vld [vmem:[%s309 + $0xc8] sm:$0xff]
        %v408 = vld [vmem:[%s309 + $0xd0] sm:$0xff]
        %v409 = vld [vmem:[%s309 + $0xd8] sm:$0xff]
        %v410 = vld [vmem:[%s309 + $0xe0] sm:$0xff]
        %v411 = vld [vmem:[%s309 + $0xe8] sm:$0xff]
        %v412 = vld [vmem:[%s309 + $0xf0] sm:$0xff]
        %v413 = vld [vmem:[%s309 + $0xf8] sm:$0xff]
        %v414 = vld [vmem:[%s309 + $0x100] sm:$0xff]
        %v415 = vld [vmem:[%s309 + $0x108] sm:$0xff]
        %v416 = vld [vmem:[%s309 + $0x110] sm:$0xff]
        %v417 = vld [vmem:[%s309 + $0x118] sm:$0xff]
        %v418 = vld [vmem:[%s309 + $0x120] sm:$0xff]
        %v419 = vld [vmem:[%s309 + $0x128] sm:$0xff]
        %v420 = vld [vmem:[%s309 + $0x130] sm:$0xff]
        %v421 = vld [vmem:[%s309 + $0x138] sm:$0xff]
        %v422 = vld [vmem:[%s309 + $0x140] sm:$0xff]
        %v423 = vld [vmem:[%s309 + $0x148] sm:$0xff]
        %v424 = vld [vmem:[%s309 + $0x150] sm:$0xff]
        %v425 = vld [vmem:[%s309 + $0x158] sm:$0xff]
        %v426 = vld [vmem:[%s309 + $0x160] sm:$0xff]
        %v427 = vld [vmem:[%s309 + $0x168] sm:$0xff]
        %v428 = vld [vmem:[%s309 + $0x170] sm:$0xff]
        %v429 = vld [vmem:[%s309 + $0x178] sm:$0xff]
        %v430 = vld [vmem:[%s309 + $0x180] sm:$0xff]
        %v431 = vld [vmem:[%s309 + $0x188] sm:$0xff]
        %v432 = vld [vmem:[%s309 + $0x190] sm:$0xff]
        %v433 = vld [vmem:[%s309 + $0x198] sm:$0xff]
        %v434 = vld [vmem:[%s309 + $0x1a0] sm:$0xff]
        %v435 = vld [vmem:[%s309 + $0x1a8] sm:$0xff]
        %v436 = vld [vmem:[%s309 + $0x1b0] sm:$0xff]
        %v437 = vld [vmem:[%s309 + $0x1b8] sm:$0xff]
        %v438 = vld [vmem:[%s309 + $0x1c0] sm:$0xff]
        %v439 = vld [vmem:[%s309 + $0x1c8] sm:$0xff]
        %v440 = vld [vmem:[%s309 + $0x1d0] sm:$0xff]
        %v441 = vld [vmem:[%s309 + $0x1d8] sm:$0xff]
        %v442 = vld [vmem:[%s309 + $0x1e0] sm:$0xff]
        %v443 = vld [vmem:[%s309 + $0x1e8] sm:$0xff]
        %v444 = vld [vmem:[%s309 + $0x1f0] sm:$0xff]
        %v445 = vld [vmem:[%s309 + $0x1f8] sm:$0xff]
        %v446 = vld [vmem:[%s309 + $0x200] sm:$0xff]
        %v447 = vld [vmem:[%s309 + $0x208] sm:$0xff]
        %v448 = vld [vmem:[%s309 + $0x210] sm:$0xff]
        %v449 = vld [vmem:[%s309 + $0x218] sm:$0xff]
        %v450 = vld [vmem:[%s309 + $0x220] sm:$0xff]
        %v451 = vld [vmem:[%s309 + $0x228] sm:$0xff]
        %v452 = vld [vmem:[%s309 + $0x230] sm:$0xff]
        %v453 = vld [vmem:[%s309 + $0x238] sm:$0xff]
        %v454 = vld [vmem:[%s309 + $0x240] sm:$0xff]
        %v455 = vld [vmem:[%s309 + $0x248] sm:$0xff]
        %v456 = vld [vmem:[%s309 + $0x250] sm:$0xff]
        %v457 = vld [vmem:[%s309 + $0x258] sm:$0xff]
        %v458 = vld [vmem:[%s309 + $0x260] sm:$0xff]
        %v459 = vld [vmem:[%s309 + $0x268] sm:$0xff]
        %v460 = vld [vmem:[%s309 + $0x270] sm:$0xff]
        %v461 = vld [vmem:[%s309 + $0x278] sm:$0xff]
        %v462 = vld [vmem:[%s309 + $0x280] sm:$0xff]
        %v463 = vld [vmem:[%s309 + $0x288] sm:$0xff]
        %v464 = vld [vmem:[%s309 + $0x290] sm:$0xff]
        %v465 = vld [vmem:[%s309 + $0x298] sm:$0xff]
        %v466 = vld [vmem:[%s309 + $0x2a0] sm:$0xff]
        %v467 = vld [vmem:[%s309 + $0x2a8] sm:$0xff]
        %v468 = vld [vmem:[%s309 + $0x2b0] sm:$0xff]
        %v469 = vld [vmem:[%s309 + $0x2b8] sm:$0xff]
        %v470 = vld [vmem:[%s309 + $0x2c0] sm:$0xff]
        %v471 = vld [vmem:[%s309 + $0x2c8] sm:$0xff]
        %v472 = vld [vmem:[%s309 + $0x2d0] sm:$0xff]
        %v473 = vld [vmem:[%s309 + $0x2d8] sm:$0xff]
        %v474 = vld [vmem:[%s309 + $0x2e0] sm:$0xff]
        %v475 = vld [vmem:[%s309 + $0x2e8] sm:$0xff]
        %v476 = vld [vmem:[%s309 + $0x2f0] sm:$0xff]
        %v477 = vld [vmem:[%s309 + $0x2f8] sm:$0xff]
        %v478 = vld [vmem:[%s309 + $0x300] sm:$0xff]
        %v479 = vld [vmem:[%s309 + $0x308] sm:$0xff]
        %v480 = vld [vmem:[%s309 + $0x310] sm:$0xff]
        %v481 = vld [vmem:[%s309 + $0x318] sm:$0xff]
        %v482 = vld [vmem:[%s309 + $0x320] sm:$0xff]
        %v483 = vld [vmem:[%s309 + $0x328] sm:$0xff]
        %v484 = vld [vmem:[%s309 + $0x330] sm:$0xff]
        %v485 = vld [vmem:[%s309 + $0x338] sm:$0xff]
        %v486 = vld [vmem:[%s309 + $0x340] sm:$0xff]
        %v487 = vld [vmem:[%s309 + $0x348] sm:$0xff]
        %v488 = vld [vmem:[%s309 + $0x350] sm:$0xff]
        %v489 = vld [vmem:[%s309 + $0x358] sm:$0xff]
        %v490 = vld [vmem:[%s309 + $0x360] sm:$0xff]
        %v491 = vld [vmem:[%s309 + $0x368] sm:$0xff]
        %v492 = vld [vmem:[%s309 + $0x370] sm:$0xff]
        %v493 = vld [vmem:[%s309 + $0x378] sm:$0xff]
        %v494 = vld [vmem:[%s309 + $0x380] sm:$0xff]
        %v495 = vld [vmem:[%s309 + $0x388] sm:$0xff]
        %v496 = vld [vmem:[%s309 + $0x390] sm:$0xff]
        %v497 = vld [vmem:[%s309 + $0x398] sm:$0xff]
        %v498 = vld [vmem:[%s309 + $0x3a0] sm:$0xff]
        %v499 = vld [vmem:[%s309 + $0x3a8] sm:$0xff]
        %v500 = vld [vmem:[%s309 + $0x3b0] sm:$0xff]
        %v501 = vld [vmem:[%s309 + $0x3b8] sm:$0xff]
        %v502 = vld [vmem:[%s309 + $0x3c0] sm:$0xff]
        %v503 = vld [vmem:[%s309 + $0x3c8] sm:$0xff]
        %v504 = vld [vmem:[%s309 + $0x3d0] sm:$0xff]
        %v505 = vld [vmem:[%s309 + $0x3d8] sm:$0xff]
        %v506 = vld [vmem:[%s309 + $0x3e0] sm:$0xff]
        %v507 = vld [vmem:[%s309 + $0x3e8] sm:$0xff]
        %v508 = vld [vmem:[%s309 + $0x3f0] sm:$0xff]
        %v509 = vld [vmem:[%s309 + $0x3f8] sm:$0xff]
        %v510 = vld [vmem:[%s318] sm:$0xf]
        %v512 = vlaneseq
        %v513 = vshrl.u32 %v512, 7
        %v514 = vsub.s32 0, %v513
        %v515 = vrot.slane %v510, %v514
        %v516 = vlaneseq
        %v517 = vshrl.u32 %v516, 7
        %v518 = vsub.s32 1, %v517
        %v519 = vrot.slane %v510, %v518
        %v520 = vlaneseq
        %v521 = vshrl.u32 %v520, 7
        %v522 = vsub.s32 2, %v521
        %v523 = vrot.slane %v510, %v522
        %v524 = vlaneseq
        %v525 = vshrl.u32 %v524, 7
        %v526 = vsub.s32 3, %v525
        %v527 = vrot.slane %v510, %v526
        %v534 = vunpack.c.l.b16 %v380
        %v535 = vunpack.c.h.b16 %v380
        %v536 = vunpack.c.l.b16 %v381
        %v537 = vunpack.c.h.b16 %v381
        %v538 = vpack.c.b16 %v534, %v534
        %v539 = vpack.c.b16 %v535, %v535
        %v540 = vpack.c.b16 %v536, %v536
        %v541 = vpack.c.b16 %v537, %v537
        %v674 = vunpack.c.l.b16 %v382
        %v675 = vunpack.c.h.b16 %v382
        %v676 = vunpack.c.l.b16 %v383
        %v677 = vunpack.c.h.b16 %v383
        %v678 = vunpack.c.l.b16 %v384
        %v679 = vunpack.c.h.b16 %v384
        %v680 = vunpack.c.l.b16 %v385
        %v681 = vunpack.c.h.b16 %v385
        %v682 = vunpack.c.l.b16 %v386
        %v683 = vunpack.c.h.b16 %v386
        %v684 = vunpack.c.l.b16 %v387
        %v685 = vunpack.c.h.b16 %v387
        %v686 = vunpack.c.l.b16 %v388
        %v687 = vunpack.c.h.b16 %v388
        %v688 = vunpack.c.l.b16 %v389
        %v689 = vunpack.c.h.b16 %v389
        %v690 = vunpack.c.l.b16 %v390
        %v691 = vunpack.c.h.b16 %v390
        %v692 = vunpack.c.l.b16 %v391
        %v693 = vunpack.c.h.b16 %v391
        %v694 = vunpack.c.l.b16 %v392
        %v695 = vunpack.c.h.b16 %v392
        %v696 = vunpack.c.l.b16 %v393
        %v697 = vunpack.c.h.b16 %v393
        %v698 = vunpack.c.l.b16 %v394
        %v699 = vunpack.c.h.b16 %v394
        %v700 = vunpack.c.l.b16 %v395
        %v701 = vunpack.c.h.b16 %v395
        %v702 = vunpack.c.l.b16 %v396
        %v703 = vunpack.c.h.b16 %v396
        %v704 = vunpack.c.l.b16 %v397
        %v705 = vunpack.c.h.b16 %v397
        %v706 = vunpack.c.l.b16 %v398
        %v707 = vunpack.c.h.b16 %v398
        %v708 = vunpack.c.l.b16 %v399
        %v709 = vunpack.c.h.b16 %v399
        %v710 = vunpack.c.l.b16 %v400
        %v711 = vunpack.c.h.b16 %v400
        %v712 = vunpack.c.l.b16 %v401
        %v713 = vunpack.c.h.b16 %v401
        %v714 = vunpack.c.l.b16 %v402
        %v715 = vunpack.c.h.b16 %v402
        %v716 = vunpack.c.l.b16 %v403
        %v717 = vunpack.c.h.b16 %v403
        %v718 = vunpack.c.l.b16 %v404
        %v719 = vunpack.c.h.b16 %v404
        %v720 = vunpack.c.l.b16 %v405
        %v721 = vunpack.c.h.b16 %v405
        %v722 = vunpack.c.l.b16 %v406
        %v723 = vunpack.c.h.b16 %v406
        %v724 = vunpack.c.l.b16 %v407
        %v725 = vunpack.c.h.b16 %v407
        %v726 = vunpack.c.l.b16 %v408
        %v727 = vunpack.c.h.b16 %v408
        %v728 = vunpack.c.l.b16 %v409
        %v729 = vunpack.c.h.b16 %v409
        %v730 = vunpack.c.l.b16 %v410
        %v731 = vunpack.c.h.b16 %v410
        %v732 = vunpack.c.l.b16 %v411
        %v733 = vunpack.c.h.b16 %v411
        %v734 = vunpack.c.l.b16 %v412
        %v735 = vunpack.c.h.b16 %v412
        %v736 = vunpack.c.l.b16 %v413
        %v737 = vunpack.c.h.b16 %v413
        %v738 = vunpack.c.l.b16 %v414
        %v739 = vunpack.c.h.b16 %v414
        %v740 = vunpack.c.l.b16 %v415
        %v741 = vunpack.c.h.b16 %v415
        %v742 = vunpack.c.l.b16 %v416
        %v743 = vunpack.c.h.b16 %v416
        %v744 = vunpack.c.l.b16 %v417
        %v745 = vunpack.c.h.b16 %v417
        %v746 = vunpack.c.l.b16 %v418
        %v747 = vunpack.c.h.b16 %v418
        %v748 = vunpack.c.l.b16 %v419
        %v749 = vunpack.c.h.b16 %v419
        %v750 = vunpack.c.l.b16 %v420
        %v751 = vunpack.c.h.b16 %v420
        %v752 = vunpack.c.l.b16 %v421
        %v753 = vunpack.c.h.b16 %v421
        %v754 = vunpack.c.l.b16 %v422
        %v755 = vunpack.c.h.b16 %v422
        %v756 = vunpack.c.l.b16 %v423
        %v757 = vunpack.c.h.b16 %v423
        %v758 = vunpack.c.l.b16 %v424
        %v759 = vunpack.c.h.b16 %v424
        %v760 = vunpack.c.l.b16 %v425
        %v761 = vunpack.c.h.b16 %v425
        %v762 = vunpack.c.l.b16 %v426
        %v763 = vunpack.c.h.b16 %v426
        %v764 = vunpack.c.l.b16 %v427
        %v765 = vunpack.c.h.b16 %v427
        %v766 = vunpack.c.l.b16 %v428
        %v767 = vunpack.c.h.b16 %v428
        %v768 = vunpack.c.l.b16 %v429
        %v769 = vunpack.c.h.b16 %v429
        %v770 = vunpack.c.l.b16 %v430
        %v771 = vunpack.c.h.b16 %v430
        %v772 = vunpack.c.l.b16 %v431
        %v773 = vunpack.c.h.b16 %v431
        %v774 = vunpack.c.l.b16 %v432
        %v775 = vunpack.c.h.b16 %v432
        %v776 = vunpack.c.l.b16 %v433
        %v777 = vunpack.c.h.b16 %v433
        %v778 = vunpack.c.l.b16 %v434
        %v779 = vunpack.c.h.b16 %v434
        %v780 = vunpack.c.l.b16 %v435
        %v781 = vunpack.c.h.b16 %v435
        %v782 = vunpack.c.l.b16 %v436
        %v783 = vunpack.c.h.b16 %v436
        %v784 = vunpack.c.l.b16 %v437
        %v785 = vunpack.c.h.b16 %v437
        %v786 = vunpack.c.l.b16 %v438
        %v787 = vunpack.c.h.b16 %v438
        %v788 = vunpack.c.l.b16 %v439
        %v789 = vunpack.c.h.b16 %v439
        %v790 = vunpack.c.l.b16 %v440
        %v791 = vunpack.c.h.b16 %v440
        %v792 = vunpack.c.l.b16 %v441
        %v793 = vunpack.c.h.b16 %v441
        %v794 = vunpack.c.l.b16 %v442
        %v795 = vunpack.c.h.b16 %v442
        %v796 = vunpack.c.l.b16 %v443
        %v797 = vunpack.c.h.b16 %v443
        %v798 = vunpack.c.l.b16 %v444
        %v799 = vunpack.c.h.b16 %v444
        %v800 = vunpack.c.l.b16 %v445
        %v801 = vunpack.c.h.b16 %v445
        %v802 = vunpack.c.l.b16 %v446
        %v803 = vunpack.c.h.b16 %v446
        %v804 = vunpack.c.l.b16 %v447
        %v805 = vunpack.c.h.b16 %v447
        %v806 = vunpack.c.l.b16 %v448
        %v807 = vunpack.c.h.b16 %v448
        %v808 = vunpack.c.l.b16 %v449
        %v809 = vunpack.c.h.b16 %v449
        %v810 = vunpack.c.l.b16 %v450
        %v811 = vunpack.c.h.b16 %v450
        %v812 = vunpack.c.l.b16 %v451
        %v813 = vunpack.c.h.b16 %v451
        %v814 = vunpack.c.l.b16 %v452
        %v815 = vunpack.c.h.b16 %v452
        %v816 = vunpack.c.l.b16 %v453
        %v817 = vunpack.c.h.b16 %v453
        %v818 = vunpack.c.l.b16 %v454
        %v819 = vunpack.c.h.b16 %v454
        %v820 = vunpack.c.l.b16 %v455
        %v821 = vunpack.c.h.b16 %v455
        %v822 = vunpack.c.l.b16 %v456
        %v823 = vunpack.c.h.b16 %v456
        %v824 = vunpack.c.l.b16 %v457
        %v825 = vunpack.c.h.b16 %v457
        %v826 = vunpack.c.l.b16 %v458
        %v827 = vunpack.c.h.b16 %v458
        %v828 = vunpack.c.l.b16 %v459
        %v829 = vunpack.c.h.b16 %v459
        %v830 = vunpack.c.l.b16 %v460
        %v831 = vunpack.c.h.b16 %v460
        %v832 = vunpack.c.l.b16 %v461
        %v833 = vunpack.c.h.b16 %v461
        %v834 = vunpack.c.l.b16 %v462
        %v835 = vunpack.c.h.b16 %v462
        %v836 = vunpack.c.l.b16 %v463
        %v837 = vunpack.c.h.b16 %v463
        %v838 = vunpack.c.l.b16 %v464
        %v839 = vunpack.c.h.b16 %v464
        %v840 = vunpack.c.l.b16 %v465
        %v841 = vunpack.c.h.b16 %v465
        %v842 = vunpack.c.l.b16 %v466
        %v843 = vunpack.c.h.b16 %v466
        %v844 = vunpack.c.l.b16 %v467
        %v845 = vunpack.c.h.b16 %v467
        %v846 = vunpack.c.l.b16 %v468
        %v847 = vunpack.c.h.b16 %v468
        %v848 = vunpack.c.l.b16 %v469
        %v849 = vunpack.c.h.b16 %v469
        %v850 = vunpack.c.l.b16 %v470
        %v851 = vunpack.c.h.b16 %v470
        %v852 = vunpack.c.l.b16 %v471
        %v853 = vunpack.c.h.b16 %v471
        %v854 = vunpack.c.l.b16 %v472
        %v855 = vunpack.c.h.b16 %v472
        %v856 = vunpack.c.l.b16 %v473
        %v857 = vunpack.c.h.b16 %v473
        %v858 = vunpack.c.l.b16 %v474
        %v859 = vunpack.c.h.b16 %v474
        %v860 = vunpack.c.l.b16 %v475
        %v861 = vunpack.c.h.b16 %v475
        %v862 = vunpack.c.l.b16 %v476
        %v863 = vunpack.c.h.b16 %v476
        %v864 = vunpack.c.l.b16 %v477
        %v865 = vunpack.c.h.b16 %v477
        %v866 = vunpack.c.l.b16 %v478
        %v867 = vunpack.c.h.b16 %v478
        %v868 = vunpack.c.l.b16 %v479
        %v869 = vunpack.c.h.b16 %v479
        %v870 = vunpack.c.l.b16 %v480
        %v871 = vunpack.c.h.b16 %v480
        %v872 = vunpack.c.l.b16 %v481
        %v873 = vunpack.c.h.b16 %v481
        %v874 = vunpack.c.l.b16 %v482
        %v875 = vunpack.c.h.b16 %v482
        %v876 = vunpack.c.l.b16 %v483
        %v877 = vunpack.c.h.b16 %v483
        %v878 = vunpack.c.l.b16 %v484
        %v879 = vunpack.c.h.b16 %v484
        %v880 = vunpack.c.l.b16 %v485
        %v881 = vunpack.c.h.b16 %v485
        %v882 = vunpack.c.l.b16 %v486
        %v883 = vunpack.c.h.b16 %v486
        %v884 = vunpack.c.l.b16 %v487
        %v885 = vunpack.c.h.b16 %v487
        %v886 = vunpack.c.l.b16 %v488
        %v887 = vunpack.c.h.b16 %v488
        %v888 = vunpack.c.l.b16 %v489
        %v889 = vunpack.c.h.b16 %v489
        %v890 = vunpack.c.l.b16 %v490
        %v891 = vunpack.c.h.b16 %v490
        %v892 = vunpack.c.l.b16 %v491
        %v893 = vunpack.c.h.b16 %v491
        %v894 = vunpack.c.l.b16 %v492
        %v895 = vunpack.c.h.b16 %v492
        %v896 = vunpack.c.l.b16 %v493
        %v897 = vunpack.c.h.b16 %v493
        %v898 = vunpack.c.l.b16 %v494
        %v899 = vunpack.c.h.b16 %v494
        %v900 = vunpack.c.l.b16 %v495
        %v901 = vunpack.c.h.b16 %v495
        %v902 = vunpack.c.l.b16 %v496
        %v903 = vunpack.c.h.b16 %v496
        %v904 = vunpack.c.l.b16 %v497
        %v905 = vunpack.c.h.b16 %v497
        %v906 = vunpack.c.l.b16 %v498
        %v907 = vunpack.c.h.b16 %v498
        %v908 = vunpack.c.l.b16 %v499
        %v909 = vunpack.c.h.b16 %v499
        %v910 = vunpack.c.l.b16 %v500
        %v911 = vunpack.c.h.b16 %v500
        %v912 = vunpack.c.l.b16 %v501
        %v913 = vunpack.c.h.b16 %v501
        %v914 = vunpack.c.l.b16 %v502
        %v915 = vunpack.c.h.b16 %v502
        %v916 = vunpack.c.l.b16 %v503
        %v917 = vunpack.c.h.b16 %v503
        %v918 = vunpack.c.l.b16 %v504
        %v919 = vunpack.c.h.b16 %v504
        %v920 = vunpack.c.l.b16 %v505
        %v921 = vunpack.c.h.b16 %v505
        %v922 = vunpack.c.l.b16 %v506
        %v923 = vunpack.c.h.b16 %v506
        %v924 = vunpack.c.l.b16 %v507
        %v925 = vunpack.c.h.b16 %v507
        %v926 = vunpack.c.l.b16 %v508
        %v927 = vunpack.c.h.b16 %v508
        %v928 = vunpack.c.l.b16 %v509
        %v929 = vunpack.c.h.b16 %v509
        %v930 = vpack.c.b16 %v678, %v674
        %v931 = vpack.c.b16 %v679, %v675
        %v932 = vpack.c.b16 %v680, %v676
        %v933 = vpack.c.b16 %v681, %v677
        %v934 = vpack.c.b16 %v686, %v682
        %v935 = vpack.c.b16 %v687, %v683
        %v936 = vpack.c.b16 %v688, %v684
        %v937 = vpack.c.b16 %v689, %v685
        %v938 = vpack.c.b16 %v694, %v690
        %v939 = vpack.c.b16 %v695, %v691
        %v940 = vpack.c.b16 %v696, %v692
        %v941 = vpack.c.b16 %v697, %v693
        %v942 = vpack.c.b16 %v702, %v698
        %v943 = vpack.c.b16 %v703, %v699
        %v944 = vpack.c.b16 %v704, %v700
        %v945 = vpack.c.b16 %v705, %v701
        %v946 = vpack.c.b16 %v710, %v706
        %v947 = vpack.c.b16 %v711, %v707
        %v948 = vpack.c.b16 %v712, %v708
        %v949 = vpack.c.b16 %v713, %v709
        %v950 = vpack.c.b16 %v718, %v714
        %v951 = vpack.c.b16 %v719, %v715
        %v952 = vpack.c.b16 %v720, %v716
        %v953 = vpack.c.b16 %v721, %v717
        %v954 = vpack.c.b16 %v726, %v722
        %v955 = vpack.c.b16 %v727, %v723
        %v956 = vpack.c.b16 %v728, %v724
        %v957 = vpack.c.b16 %v729, %v725
        %v958 = vpack.c.b16 %v734, %v730
        %v959 = vpack.c.b16 %v735, %v731
        %v960 = vpack.c.b16 %v736, %v732
        %v961 = vpack.c.b16 %v737, %v733
        %v962 = vpack.c.b16 %v742, %v738
        %v963 = vpack.c.b16 %v743, %v739
        %v964 = vpack.c.b16 %v744, %v740
        %v965 = vpack.c.b16 %v745, %v741
        %v966 = vpack.c.b16 %v750, %v746
        %v967 = vpack.c.b16 %v751, %v747
        %v968 = vpack.c.b16 %v752, %v748
        %v969 = vpack.c.b16 %v753, %v749
        %v970 = vpack.c.b16 %v758, %v754
        %v971 = vpack.c.b16 %v759, %v755
        %v972 = vpack.c.b16 %v760, %v756
        %v973 = vpack.c.b16 %v761, %v757
        %v974 = vpack.c.b16 %v766, %v762
        %v975 = vpack.c.b16 %v767, %v763
        %v976 = vpack.c.b16 %v768, %v764
        %v977 = vpack.c.b16 %v769, %v765
        %v978 = vpack.c.b16 %v774, %v770
        %v979 = vpack.c.b16 %v775, %v771
        %v980 = vpack.c.b16 %v776, %v772
        %v981 = vpack.c.b16 %v777, %v773
        %v982 = vpack.c.b16 %v782, %v778
        %v983 = vpack.c.b16 %v783, %v779
        %v984 = vpack.c.b16 %v784, %v780
        %v985 = vpack.c.b16 %v785, %v781
        %v986 = vpack.c.b16 %v790, %v786
        %v987 = vpack.c.b16 %v791, %v787
        %v988 = vpack.c.b16 %v792, %v788
        %v989 = vpack.c.b16 %v793, %v789
        %v990 = vpack.c.b16 %v798, %v794
        %v991 = vpack.c.b16 %v799, %v795
        %v992 = vpack.c.b16 %v800, %v796
        %v993 = vpack.c.b16 %v801, %v797
        %v994 = vpack.c.b16 %v806, %v802
        %v995 = vpack.c.b16 %v807, %v803
        %v996 = vpack.c.b16 %v808, %v804
        %v997 = vpack.c.b16 %v809, %v805
        %v998 = vpack.c.b16 %v814, %v810
        %v999 = vpack.c.b16 %v815, %v811
        %v1000 = vpack.c.b16 %v816, %v812
        %v1001 = vpack.c.b16 %v817, %v813
        %v1002 = vpack.c.b16 %v822, %v818
        %v1003 = vpack.c.b16 %v823, %v819
        %v1004 = vpack.c.b16 %v824, %v820
        %v1005 = vpack.c.b16 %v825, %v821
        %v1006 = vpack.c.b16 %v830, %v826
        %v1007 = vpack.c.b16 %v831, %v827
        %v1008 = vpack.c.b16 %v832, %v828
        %v1009 = vpack.c.b16 %v833, %v829
        %v1010 = vpack.c.b16 %v838, %v834
        %v1011 = vpack.c.b16 %v839, %v835
        %v1012 = vpack.c.b16 %v840, %v836
        %v1013 = vpack.c.b16 %v841, %v837
        %v1014 = vpack.c.b16 %v846, %v842
        %v1015 = vpack.c.b16 %v847, %v843
        %v1016 = vpack.c.b16 %v848, %v844
        %v1017 = vpack.c.b16 %v849, %v845
        %v1018 = vpack.c.b16 %v854, %v850
        %v1019 = vpack.c.b16 %v855, %v851
        %v1020 = vpack.c.b16 %v856, %v852
        %v1021 = vpack.c.b16 %v857, %v853
        %v1022 = vpack.c.b16 %v862, %v858
        %v1023 = vpack.c.b16 %v863, %v859
        %v1024 = vpack.c.b16 %v864, %v860
        %v1025 = vpack.c.b16 %v865, %v861
        %v1026 = vpack.c.b16 %v870, %v866
        %v1027 = vpack.c.b16 %v871, %v867
        %v1028 = vpack.c.b16 %v872, %v868
        %v1029 = vpack.c.b16 %v873, %v869
        %v1030 = vpack.c.b16 %v878, %v874
        %v1031 = vpack.c.b16 %v879, %v875
        %v1032 = vpack.c.b16 %v880, %v876
        %v1033 = vpack.c.b16 %v881, %v877
        %v1034 = vpack.c.b16 %v886, %v882
        %v1035 = vpack.c.b16 %v887, %v883
        %v1036 = vpack.c.b16 %v888, %v884
        %v1037 = vpack.c.b16 %v889, %v885
        %v1038 = vpack.c.b16 %v894, %v890
        %v1039 = vpack.c.b16 %v895, %v891
        %v1040 = vpack.c.b16 %v896, %v892
        %v1041 = vpack.c.b16 %v897, %v893
        %v1042 = vpack.c.b16 %v902, %v898
        %v1043 = vpack.c.b16 %v903, %v899
        %v1044 = vpack.c.b16 %v904, %v900
        %v1045 = vpack.c.b16 %v905, %v901
        %v1046 = vpack.c.b16 %v910, %v906
        %v1047 = vpack.c.b16 %v911, %v907
        %v1048 = vpack.c.b16 %v912, %v908
        %v1049 = vpack.c.b16 %v913, %v909
        %v1050 = vpack.c.b16 %v918, %v914
        %v1051 = vpack.c.b16 %v919, %v915
        %v1052 = vpack.c.b16 %v920, %v916
        %v1053 = vpack.c.b16 %v921, %v917
        %v1054 = vpack.c.b16 %v926, %v922
        %v1055 = vpack.c.b16 %v927, %v923
        %v1056 = vpack.c.b16 %v928, %v924
        %v1057 = vpack.c.b16 %v929, %v925
        %1186 = vmatprep.subr.bf16.mxu0 %v959
        %1187 = vmatpush1.bf16.msra.mxu0 %v958
        %1188 = vmatprep.subr.bf16.mxu0 %v955
        %1189 = vmatpush1.bf16.msra.mxu0 %v954
        %1190 = vmatprep.subr.bf16.mxu0 %v951
        %1191 = vmatpush1.bf16.msra.mxu0 %v950
        %1192 = vmatprep.subr.bf16.mxu0 %v947
        %1193 = vmatpush1.bf16.msra.mxu0 %v946
        %1194 = vmatprep.subr.bf16.mxu0 %v943
        %1195 = vmatpush1.bf16.msra.mxu0 %v942
        %1196 = vmatprep.subr.bf16.mxu0 %v939
        %1197 = vmatpush1.bf16.msra.mxu0 %v938
        %1198 = vmatprep.subr.bf16.mxu0 %v935
        %1199 = vmatpush1.bf16.msra.mxu0 %v934
        %1200 = vmatprep.subr.bf16.mxu0 %v931
        %1201 = vmatpush1.bf16.msra.mxu0 %v930
        %1202 = vmatprep.subr.bf16.mxu0 %v991
        %1203 = vmatpush2.bf16.msra.mxu0 %v990
        %1204 = vmatprep.subr.bf16.mxu0 %v987
        %1205 = vmatpush2.bf16.msra.mxu0 %v986
        %1206 = vmatprep.subr.bf16.mxu0 %v983
        %1207 = vmatpush2.bf16.msra.mxu0 %v982
        %1208 = vmatprep.subr.bf16.mxu0 %v979
        %1209 = vmatpush2.bf16.msra.mxu0 %v978
        %1210 = vmatprep.subr.bf16.mxu0 %v975
        %1211 = vmatpush2.bf16.msra.mxu0 %v974
        %1212 = vmatprep.subr.bf16.mxu0 %v971
        %1213 = vmatpush2.bf16.msra.mxu0 %v970
        %1214 = vmatprep.subr.bf16.mxu0 %v967
        %1215 = vmatpush2.bf16.msra.mxu0 %v966
        %1216 = vmatprep.subr.bf16.mxu0 %v963
        %1217 = vmatpush2.bf16.msra.mxu0 %v962
        %1218 = vmatprep.mubr.bf16.mxu0 %v539
        %1219 = vmatmul.mubr.bf16.gmra.mxu0 %v538
        %v1220 = vpop.f32.mrf.mxu0
        %v1221 = vadd.f32 %v515, %v1220
        %v1222 = vpop.f32.mrf.mxu0
        %v1223 = vadd.f32 %v519, %v1222
        %v1224 = vpop.f32.mrf.mxu0
        %v1225 = vpop.f32.mrf.mxu0
        %1226 = vdwg.mxu0
        %1227 = vmatprep.subr.bf16.mxu0 %v1023
        %1228 = vmatpush1.bf16.msra.mxu0 %v1022
        %1229 = vmatprep.subr.bf16.mxu0 %v1019
        %1230 = vmatpush1.bf16.msra.mxu0 %v1018
        %1231 = vmatprep.subr.bf16.mxu0 %v1015
        %1232 = vmatpush1.bf16.msra.mxu0 %v1014
        %1233 = vmatprep.subr.bf16.mxu0 %v1011
        %1234 = vmatpush1.bf16.msra.mxu0 %v1010
        %1235 = vmatprep.subr.bf16.mxu0 %v1007
        %1236 = vmatpush1.bf16.msra.mxu0 %v1006
        %1237 = vmatprep.subr.bf16.mxu0 %v1003
        %1238 = vmatpush1.bf16.msra.mxu0 %v1002
        %1239 = vmatprep.subr.bf16.mxu0 %v999
        %1240 = vmatpush1.bf16.msra.mxu0 %v998
        %1241 = vmatprep.subr.bf16.mxu0 %v995
        %1242 = vmatpush1.bf16.msra.mxu0 %v994
        %1243 = vmatprep.subr.bf16.mxu0 %v1055
        %1244 = vmatpush2.bf16.msra.mxu0 %v1054
        %1245 = vmatprep.subr.bf16.mxu0 %v1051
        %1246 = vmatpush2.bf16.msra.mxu0 %v1050
        %1247 = vmatprep.subr.bf16.mxu0 %v1047
        %1248 = vmatpush2.bf16.msra.mxu0 %v1046
        %1249 = vmatprep.subr.bf16.mxu0 %v1043
        %1250 = vmatpush2.bf16.msra.mxu0 %v1042
        %1251 = vmatprep.subr.bf16.mxu0 %v1039
        %1252 = vmatpush2.bf16.msra.mxu0 %v1038
        %1253 = vmatprep.subr.bf16.mxu0 %v1035
        %1254 = vmatpush2.bf16.msra.mxu0 %v1034
        %1255 = vmatprep.subr.bf16.mxu0 %v1031
        %1256 = vmatpush2.bf16.msra.mxu0 %v1030
        %1257 = vmatprep.subr.bf16.mxu0 %v1027
        %1258 = vmatpush2.bf16.msra.mxu0 %v1026
        %1259 = vmatprep.mubr.bf16.mxu0 %v541
        %1260 = vmatmul.mubr.bf16.gmra.mxu0 %v540
        %v1261 = vpop.f32.mrf.mxu0
        %v1262 = vadd.f32 %v1221, %v1261
        %v1263 = vpop.f32.mrf.mxu0
        %v1264 = vadd.f32 %v1223, %v1263
        %v1265 = vpop.f32.mrf.mxu0
        %v1266 = vpop.f32.mrf.mxu0
        %1267 = vdwg.mxu0
        %1268 = vmatprep.subr.bf16.mxu0 %v961
        %1269 = vmatpush1.bf16.msra.mxu0 %v960
        %1270 = vmatprep.subr.bf16.mxu0 %v957
        %1271 = vmatpush1.bf16.msra.mxu0 %v956
        %1272 = vmatprep.subr.bf16.mxu0 %v953
        %1273 = vmatpush1.bf16.msra.mxu0 %v952
        %1274 = vmatprep.subr.bf16.mxu0 %v949
        %1275 = vmatpush1.bf16.msra.mxu0 %v948
        %1276 = vmatprep.subr.bf16.mxu0 %v945
        %1277 = vmatpush1.bf16.msra.mxu0 %v944
        %1278 = vmatprep.subr.bf16.mxu0 %v941
        %1279 = vmatpush1.bf16.msra.mxu0 %v940
        %1280 = vmatprep.subr.bf16.mxu0 %v937
        %1281 = vmatpush1.bf16.msra.mxu0 %v936
        %1282 = vmatprep.subr.bf16.mxu0 %v933
        %1283 = vmatpush1.bf16.msra.mxu0 %v932
        %1284 = vmatprep.subr.bf16.mxu0 %v993
        %1285 = vmatpush2.bf16.msra.mxu0 %v992
        %1286 = vmatprep.subr.bf16.mxu0 %v989
        %1287 = vmatpush2.bf16.msra.mxu0 %v988
        %1288 = vmatprep.subr.bf16.mxu0 %v985
        %1289 = vmatpush2.bf16.msra.mxu0 %v984
        %1290 = vmatprep.subr.bf16.mxu0 %v981
        %1291 = vmatpush2.bf16.msra.mxu0 %v980
        %1292 = vmatprep.subr.bf16.mxu0 %v977
        %1293 = vmatpush2.bf16.msra.mxu0 %v976
        %1294 = vmatprep.subr.bf16.mxu0 %v973
        %1295 = vmatpush2.bf16.msra.mxu0 %v972
        %1296 = vmatprep.subr.bf16.mxu0 %v969
        %1297 = vmatpush2.bf16.msra.mxu0 %v968
        %1298 = vmatprep.subr.bf16.mxu0 %v965
        %1299 = vmatpush2.bf16.msra.mxu0 %v964
        %1300 = vmatprep.mubr.bf16.mxu0 %v539
        %1301 = vmatmul.mubr.bf16.gmra.mxu0 %v538
        %v1302 = vpop.f32.mrf.mxu0
        %v1303 = vadd.f32 %v523, %v1302
        %v1304 = vpop.f32.mrf.mxu0
        %v1305 = vadd.f32 %v527, %v1304
        %v1306 = vpop.f32.mrf.mxu0
        %v1307 = vpop.f32.mrf.mxu0
        %1308 = vdwg.mxu0
        %1309 = vmatprep.subr.bf16.mxu0 %v1025
        %1310 = vmatpush1.bf16.msra.mxu0 %v1024
        %1311 = vmatprep.subr.bf16.mxu0 %v1021
        %1312 = vmatpush1.bf16.msra.mxu0 %v1020
        %1313 = vmatprep.subr.bf16.mxu0 %v1017
        %1314 = vmatpush1.bf16.msra.mxu0 %v1016
        %1315 = vmatprep.subr.bf16.mxu0 %v1013
        %1316 = vmatpush1.bf16.msra.mxu0 %v1012
        %1317 = vmatprep.subr.bf16.mxu0 %v1009
        %1318 = vmatpush1.bf16.msra.mxu0 %v1008
        %1319 = vmatprep.subr.bf16.mxu0 %v1005
        %1320 = vmatpush1.bf16.msra.mxu0 %v1004
        %1321 = vmatprep.subr.bf16.mxu0 %v1001
        %1322 = vmatpush1.bf16.msra.mxu0 %v1000
        %1323 = vmatprep.subr.bf16.mxu0 %v997
        %1324 = vmatpush1.bf16.msra.mxu0 %v996
        %1325 = vmatprep.subr.bf16.mxu0 %v1057
        %1326 = vmatpush2.bf16.msra.mxu0 %v1056
        %1327 = vmatprep.subr.bf16.mxu0 %v1053
        %1328 = vmatpush2.bf16.msra.mxu0 %v1052
        %1329 = vmatprep.subr.bf16.mxu0 %v1049
        %1330 = vmatpush2.bf16.msra.mxu0 %v1048
        %1331 = vmatprep.subr.bf16.mxu0 %v1045
        %1332 = vmatpush2.bf16.msra.mxu0 %v1044
        %1333 = vmatprep.subr.bf16.mxu0 %v1041
        %1334 = vmatpush2.bf16.msra.mxu0 %v1040
        %1335 = vmatprep.subr.bf16.mxu0 %v1037
        %1336 = vmatpush2.bf16.msra.mxu0 %v1036
        %1337 = vmatprep.subr.bf16.mxu0 %v1033
        %1338 = vmatpush2.bf16.msra.mxu0 %v1032
        %1339 = vmatprep.subr.bf16.mxu0 %v1029
        %1340 = vmatpush2.bf16.msra.mxu0 %v1028
        %1341 = vmatprep.mubr.bf16.mxu0 %v541
        %1342 = vmatmul.mubr.bf16.gmra.mxu0 %v540
        %v1343 = vpop.f32.mrf.mxu0
        %v1344 = vadd.f32 %v1303, %v1343
        %v1345 = vpop.f32.mrf.mxu0
        %v1346 = vadd.f32 %v1305, %v1345
        %v1347 = vpop.f32.mrf.mxu0
        %v1348 = vpop.f32.mrf.mxu0
        %1349 = vdwg.mxu0
        %v1350 = vmul.f32 %v1262, 0.5
        %v1351 = vmul.f32 %v1264, 0.5
        %v1352 = vmul.f32 %v1344, 0.5
        %v1353 = vmul.f32 %v1346, 0.5
        %v1354 = vmul.f32 %v1262, 0.70710677
        %v1355 = vmul.f32 %v1264, 0.70710677
        %v1356 = vmul.f32 %v1344, 0.70710677
        %v1357 = vmul.f32 %v1346, 0.70710677
        %v1358 = verf.f32.pop %v1354
        %v1359 = verf.f32.pop %v1355
        %v1360 = verf.f32.pop %v1356
        %v1361 = verf.f32.pop %v1357
        %v1362 = vadd.f32 %v1358, 1.0
        %v1363 = vadd.f32 %v1359, 1.0
        %v1364 = vadd.f32 %v1360, 1.0
        %v1365 = vadd.f32 %v1361, 1.0
        %v1366 = vmul.f32 %v1350, %v1362
        %v1367 = vmul.f32 %v1351, %v1363
        %v1368 = vmul.f32 %v1352, %v1364
        %v1369 = vmul.f32 %v1353, %v1365
        %v1370 = vld [vmem:[#allocation2] sm:$0xff]
        %v1371 = vld [vmem:[#allocation2 + $0x8] sm:$0xff]
        %v1372 = vld [vmem:[#allocation2 + $0x10] sm:$0xff]
        %v1373 = vld [vmem:[#allocation2 + $0x18] sm:$0xff]
        %v1374 = vpack.c.bf16 %v1366, %v1366
        %v1375 = vpack.c.bf16 %v1367, %v1367
        %v1376 = vpack.c.bf16 %v1368, %v1368
        %v1377 = vpack.c.bf16 %v1369, %v1369
        %v1378 = vld [vmem:[%s327] sm:$0xff]
        %v1379 = vld [vmem:[%s327 + $0x8] sm:$0xff]
        %v1380 = vld [vmem:[%s327 + $0x10] sm:$0xff]
        %v1381 = vld [vmem:[%s327 + $0x18] sm:$0xff]
        %v1382 = vld [vmem:[%s327 + $0x20] sm:$0xff]
        %v1383 = vld [vmem:[%s327 + $0x28] sm:$0xff]
        %v1384 = vld [vmem:[%s327 + $0x30] sm:$0xff]
        %v1385 = vld [vmem:[%s327 + $0x38] sm:$0xff]
        %v1386 = vld [vmem:[%s327 + $0x40] sm:$0xff]
        %v1387 = vld [vmem:[%s327 + $0x48] sm:$0xff]
        %v1388 = vld [vmem:[%s327 + $0x50] sm:$0xff]
        %v1389 = vld [vmem:[%s327 + $0x58] sm:$0xff]
        %v1390 = vld [vmem:[%s327 + $0x60] sm:$0xff]
        %v1391 = vld [vmem:[%s327 + $0x68] sm:$0xff]
        %v1392 = vld [vmem:[%s327 + $0x70] sm:$0xff]
        %v1393 = vld [vmem:[%s327 + $0x78] sm:$0xff]
        %v1394 = vld [vmem:[%s327 + $0x80] sm:$0xff]
        %v1395 = vld [vmem:[%s327 + $0x88] sm:$0xff]
        %v1396 = vld [vmem:[%s327 + $0x90] sm:$0xff]
        %v1397 = vld [vmem:[%s327 + $0x98] sm:$0xff]
        %v1398 = vld [vmem:[%s327 + $0xa0] sm:$0xff]
        %v1399 = vld [vmem:[%s327 + $0xa8] sm:$0xff]
        %v1400 = vld [vmem:[%s327 + $0xb0] sm:$0xff]
        %v1401 = vld [vmem:[%s327 + $0xb8] sm:$0xff]
        %v1402 = vld [vmem:[%s327 + $0xc0] sm:$0xff]
        %v1403 = vld [vmem:[%s327 + $0xc8] sm:$0xff]
        %v1404 = vld [vmem:[%s327 + $0xd0] sm:$0xff]
        %v1405 = vld [vmem:[%s327 + $0xd8] sm:$0xff]
        %v1406 = vld [vmem:[%s327 + $0xe0] sm:$0xff]
        %v1407 = vld [vmem:[%s327 + $0xe8] sm:$0xff]
        %v1408 = vld [vmem:[%s327 + $0xf0] sm:$0xff]
        %v1409 = vld [vmem:[%s327 + $0xf8] sm:$0xff]
        %v1410 = vld [vmem:[%s327 + $0x100] sm:$0xff]
        %v1411 = vld [vmem:[%s327 + $0x108] sm:$0xff]
        %v1412 = vld [vmem:[%s327 + $0x110] sm:$0xff]
        %v1413 = vld [vmem:[%s327 + $0x118] sm:$0xff]
        %v1414 = vld [vmem:[%s327 + $0x120] sm:$0xff]
        %v1415 = vld [vmem:[%s327 + $0x128] sm:$0xff]
        %v1416 = vld [vmem:[%s327 + $0x130] sm:$0xff]
        %v1417 = vld [vmem:[%s327 + $0x138] sm:$0xff]
        %v1418 = vld [vmem:[%s327 + $0x140] sm:$0xff]
        %v1419 = vld [vmem:[%s327 + $0x148] sm:$0xff]
        %v1420 = vld [vmem:[%s327 + $0x150] sm:$0xff]
        %v1421 = vld [vmem:[%s327 + $0x158] sm:$0xff]
        %v1422 = vld [vmem:[%s327 + $0x160] sm:$0xff]
        %v1423 = vld [vmem:[%s327 + $0x168] sm:$0xff]
        %v1424 = vld [vmem:[%s327 + $0x170] sm:$0xff]
        %v1425 = vld [vmem:[%s327 + $0x178] sm:$0xff]
        %v1426 = vld [vmem:[%s327 + $0x180] sm:$0xff]
        %v1427 = vld [vmem:[%s327 + $0x188] sm:$0xff]
        %v1428 = vld [vmem:[%s327 + $0x190] sm:$0xff]
        %v1429 = vld [vmem:[%s327 + $0x198] sm:$0xff]
        %v1430 = vld [vmem:[%s327 + $0x1a0] sm:$0xff]
        %v1431 = vld [vmem:[%s327 + $0x1a8] sm:$0xff]
        %v1432 = vld [vmem:[%s327 + $0x1b0] sm:$0xff]
        %v1433 = vld [vmem:[%s327 + $0x1b8] sm:$0xff]
        %v1434 = vld [vmem:[%s327 + $0x1c0] sm:$0xff]
        %v1435 = vld [vmem:[%s327 + $0x1c8] sm:$0xff]
        %v1436 = vld [vmem:[%s327 + $0x1d0] sm:$0xff]
        %v1437 = vld [vmem:[%s327 + $0x1d8] sm:$0xff]
        %v1438 = vld [vmem:[%s327 + $0x1e0] sm:$0xff]
        %v1439 = vld [vmem:[%s327 + $0x1e8] sm:$0xff]
        %v1440 = vld [vmem:[%s327 + $0x1f0] sm:$0xff]
        %v1441 = vld [vmem:[%s327 + $0x1f8] sm:$0xff]
        %v1442 = vld [vmem:[%s327 + $0x200] sm:$0xff]
        %v1443 = vld [vmem:[%s327 + $0x208] sm:$0xff]
        %v1444 = vld [vmem:[%s327 + $0x210] sm:$0xff]
        %v1445 = vld [vmem:[%s327 + $0x218] sm:$0xff]
        %v1446 = vld [vmem:[%s327 + $0x220] sm:$0xff]
        %v1447 = vld [vmem:[%s327 + $0x228] sm:$0xff]
        %v1448 = vld [vmem:[%s327 + $0x230] sm:$0xff]
        %v1449 = vld [vmem:[%s327 + $0x238] sm:$0xff]
        %v1450 = vld [vmem:[%s327 + $0x240] sm:$0xff]
        %v1451 = vld [vmem:[%s327 + $0x248] sm:$0xff]
        %v1452 = vld [vmem:[%s327 + $0x250] sm:$0xff]
        %v1453 = vld [vmem:[%s327 + $0x258] sm:$0xff]
        %v1454 = vld [vmem:[%s327 + $0x260] sm:$0xff]
        %v1455 = vld [vmem:[%s327 + $0x268] sm:$0xff]
        %v1456 = vld [vmem:[%s327 + $0x270] sm:$0xff]
        %v1457 = vld [vmem:[%s327 + $0x278] sm:$0xff]
        %v1458 = vld [vmem:[%s327 + $0x280] sm:$0xff]
        %v1459 = vld [vmem:[%s327 + $0x288] sm:$0xff]
        %v1460 = vld [vmem:[%s327 + $0x290] sm:$0xff]
        %v1461 = vld [vmem:[%s327 + $0x298] sm:$0xff]
        %v1462 = vld [vmem:[%s327 + $0x2a0] sm:$0xff]
        %v1463 = vld [vmem:[%s327 + $0x2a8] sm:$0xff]
        %v1464 = vld [vmem:[%s327 + $0x2b0] sm:$0xff]
        %v1465 = vld [vmem:[%s327 + $0x2b8] sm:$0xff]
        %v1466 = vld [vmem:[%s327 + $0x2c0] sm:$0xff]
        %v1467 = vld [vmem:[%s327 + $0x2c8] sm:$0xff]
        %v1468 = vld [vmem:[%s327 + $0x2d0] sm:$0xff]
        %v1469 = vld [vmem:[%s327 + $0x2d8] sm:$0xff]
        %v1470 = vld [vmem:[%s327 + $0x2e0] sm:$0xff]
        %v1471 = vld [vmem:[%s327 + $0x2e8] sm:$0xff]
        %v1472 = vld [vmem:[%s327 + $0x2f0] sm:$0xff]
        %v1473 = vld [vmem:[%s327 + $0x2f8] sm:$0xff]
        %v1474 = vld [vmem:[%s327 + $0x300] sm:$0xff]
        %v1475 = vld [vmem:[%s327 + $0x308] sm:$0xff]
        %v1476 = vld [vmem:[%s327 + $0x310] sm:$0xff]
        %v1477 = vld [vmem:[%s327 + $0x318] sm:$0xff]
        %v1478 = vld [vmem:[%s327 + $0x320] sm:$0xff]
        %v1479 = vld [vmem:[%s327 + $0x328] sm:$0xff]
        %v1480 = vld [vmem:[%s327 + $0x330] sm:$0xff]
        %v1481 = vld [vmem:[%s327 + $0x338] sm:$0xff]
        %v1482 = vld [vmem:[%s327 + $0x340] sm:$0xff]
        %v1483 = vld [vmem:[%s327 + $0x348] sm:$0xff]
        %v1484 = vld [vmem:[%s327 + $0x350] sm:$0xff]
        %v1485 = vld [vmem:[%s327 + $0x358] sm:$0xff]
        %v1486 = vld [vmem:[%s327 + $0x360] sm:$0xff]
        %v1487 = vld [vmem:[%s327 + $0x368] sm:$0xff]
        %v1488 = vld [vmem:[%s327 + $0x370] sm:$0xff]
        %v1489 = vld [vmem:[%s327 + $0x378] sm:$0xff]
        %v1490 = vld [vmem:[%s327 + $0x380] sm:$0xff]
        %v1491 = vld [vmem:[%s327 + $0x388] sm:$0xff]
        %v1492 = vld [vmem:[%s327 + $0x390] sm:$0xff]
        %v1493 = vld [vmem:[%s327 + $0x398] sm:$0xff]
        %v1494 = vld [vmem:[%s327 + $0x3a0] sm:$0xff]
        %v1495 = vld [vmem:[%s327 + $0x3a8] sm:$0xff]
        %v1496 = vld [vmem:[%s327 + $0x3b0] sm:$0xff]
        %v1497 = vld [vmem:[%s327 + $0x3b8] sm:$0xff]
        %v1498 = vld [vmem:[%s327 + $0x3c0] sm:$0xff]
        %v1499 = vld [vmem:[%s327 + $0x3c8] sm:$0xff]
        %v1500 = vld [vmem:[%s327 + $0x3d0] sm:$0xff]
        %v1501 = vld [vmem:[%s327 + $0x3d8] sm:$0xff]
        %v1502 = vld [vmem:[%s327 + $0x3e0] sm:$0xff]
        %v1503 = vld [vmem:[%s327 + $0x3e8] sm:$0xff]
        %v1504 = vld [vmem:[%s327 + $0x3f0] sm:$0xff]
        %v1505 = vld [vmem:[%s327 + $0x3f8] sm:$0xff]
        %v1634 = vunpack.c.l.b16 %v1378
        %v1635 = vunpack.c.h.b16 %v1378
        %v1636 = vunpack.c.l.b16 %v1379
        %v1637 = vunpack.c.h.b16 %v1379
        %v1638 = vunpack.c.l.b16 %v1380
        %v1639 = vunpack.c.h.b16 %v1380
        %v1640 = vunpack.c.l.b16 %v1381
        %v1641 = vunpack.c.h.b16 %v1381
        %v1642 = vunpack.c.l.b16 %v1382
        %v1643 = vunpack.c.h.b16 %v1382
        %v1644 = vunpack.c.l.b16 %v1383
        %v1645 = vunpack.c.h.b16 %v1383
        %v1646 = vunpack.c.l.b16 %v1384
        %v1647 = vunpack.c.h.b16 %v1384
        %v1648 = vunpack.c.l.b16 %v1385
        %v1649 = vunpack.c.h.b16 %v1385
        %v1650 = vunpack.c.l.b16 %v1386
        %v1651 = vunpack.c.h.b16 %v1386
        %v1652 = vunpack.c.l.b16 %v1387
        %v1653 = vunpack.c.h.b16 %v1387
        %v1654 = vunpack.c.l.b16 %v1388
        %v1655 = vunpack.c.h.b16 %v1388
        %v1656 = vunpack.c.l.b16 %v1389
        %v1657 = vunpack.c.h.b16 %v1389
        %v1658 = vunpack.c.l.b16 %v1390
        %v1659 = vunpack.c.h.b16 %v1390
        %v1660 = vunpack.c.l.b16 %v1391
        %v1661 = vunpack.c.h.b16 %v1391
        %v1662 = vunpack.c.l.b16 %v1392
        %v1663 = vunpack.c.h.b16 %v1392
        %v1664 = vunpack.c.l.b16 %v1393
        %v1665 = vunpack.c.h.b16 %v1393
        %v1666 = vunpack.c.l.b16 %v1394
        %v1667 = vunpack.c.h.b16 %v1394
        %v1668 = vunpack.c.l.b16 %v1395
        %v1669 = vunpack.c.h.b16 %v1395
        %v1670 = vunpack.c.l.b16 %v1396
        %v1671 = vunpack.c.h.b16 %v1396
        %v1672 = vunpack.c.l.b16 %v1397
        %v1673 = vunpack.c.h.b16 %v1397
        %v1674 = vunpack.c.l.b16 %v1398
        %v1675 = vunpack.c.h.b16 %v1398
        %v1676 = vunpack.c.l.b16 %v1399
        %v1677 = vunpack.c.h.b16 %v1399
        %v1678 = vunpack.c.l.b16 %v1400
        %v1679 = vunpack.c.h.b16 %v1400
        %v1680 = vunpack.c.l.b16 %v1401
        %v1681 = vunpack.c.h.b16 %v1401
        %v1682 = vunpack.c.l.b16 %v1402
        %v1683 = vunpack.c.h.b16 %v1402
        %v1684 = vunpack.c.l.b16 %v1403
        %v1685 = vunpack.c.h.b16 %v1403
        %v1686 = vunpack.c.l.b16 %v1404
        %v1687 = vunpack.c.h.b16 %v1404
        %v1688 = vunpack.c.l.b16 %v1405
        %v1689 = vunpack.c.h.b16 %v1405
        %v1690 = vunpack.c.l.b16 %v1406
        %v1691 = vunpack.c.h.b16 %v1406
        %v1692 = vunpack.c.l.b16 %v1407
        %v1693 = vunpack.c.h.b16 %v1407
        %v1694 = vunpack.c.l.b16 %v1408
        %v1695 = vunpack.c.h.b16 %v1408
        %v1696 = vunpack.c.l.b16 %v1409
        %v1697 = vunpack.c.h.b16 %v1409
        %v1698 = vunpack.c.l.b16 %v1410
        %v1699 = vunpack.c.h.b16 %v1410
        %v1700 = vunpack.c.l.b16 %v1411
        %v1701 = vunpack.c.h.b16 %v1411
        %v1702 = vunpack.c.l.b16 %v1412
        %v1703 = vunpack.c.h.b16 %v1412
        %v1704 = vunpack.c.l.b16 %v1413
        %v1705 = vunpack.c.h.b16 %v1413
        %v1706 = vunpack.c.l.b16 %v1414
        %v1707 = vunpack.c.h.b16 %v1414
        %v1708 = vunpack.c.l.b16 %v1415
        %v1709 = vunpack.c.h.b16 %v1415
        %v1710 = vunpack.c.l.b16 %v1416
        %v1711 = vunpack.c.h.b16 %v1416
        %v1712 = vunpack.c.l.b16 %v1417
        %v1713 = vunpack.c.h.b16 %v1417
        %v1714 = vunpack.c.l.b16 %v1418
        %v1715 = vunpack.c.h.b16 %v1418
        %v1716 = vunpack.c.l.b16 %v1419
        %v1717 = vunpack.c.h.b16 %v1419
        %v1718 = vunpack.c.l.b16 %v1420
        %v1719 = vunpack.c.h.b16 %v1420
        %v1720 = vunpack.c.l.b16 %v1421
        %v1721 = vunpack.c.h.b16 %v1421
        %v1722 = vunpack.c.l.b16 %v1422
        %v1723 = vunpack.c.h.b16 %v1422
        %v1724 = vunpack.c.l.b16 %v1423
        %v1725 = vunpack.c.h.b16 %v1423
        %v1726 = vunpack.c.l.b16 %v1424
        %v1727 = vunpack.c.h.b16 %v1424
        %v1728 = vunpack.c.l.b16 %v1425
        %v1729 = vunpack.c.h.b16 %v1425
        %v1730 = vunpack.c.l.b16 %v1426
        %v1731 = vunpack.c.h.b16 %v1426
        %v1732 = vunpack.c.l.b16 %v1427
        %v1733 = vunpack.c.h.b16 %v1427
        %v1734 = vunpack.c.l.b16 %v1428
        %v1735 = vunpack.c.h.b16 %v1428
        %v1736 = vunpack.c.l.b16 %v1429
        %v1737 = vunpack.c.h.b16 %v1429
        %v1738 = vunpack.c.l.b16 %v1430
        %v1739 = vunpack.c.h.b16 %v1430
        %v1740 = vunpack.c.l.b16 %v1431
        %v1741 = vunpack.c.h.b16 %v1431
        %v1742 = vunpack.c.l.b16 %v1432
        %v1743 = vunpack.c.h.b16 %v1432
        %v1744 = vunpack.c.l.b16 %v1433
        %v1745 = vunpack.c.h.b16 %v1433
        %v1746 = vunpack.c.l.b16 %v1434
        %v1747 = vunpack.c.h.b16 %v1434
        %v1748 = vunpack.c.l.b16 %v1435
        %v1749 = vunpack.c.h.b16 %v1435
        %v1750 = vunpack.c.l.b16 %v1436
        %v1751 = vunpack.c.h.b16 %v1436
        %v1752 = vunpack.c.l.b16 %v1437
        %v1753 = vunpack.c.h.b16 %v1437
        %v1754 = vunpack.c.l.b16 %v1438
        %v1755 = vunpack.c.h.b16 %v1438
        %v1756 = vunpack.c.l.b16 %v1439
        %v1757 = vunpack.c.h.b16 %v1439
        %v1758 = vunpack.c.l.b16 %v1440
        %v1759 = vunpack.c.h.b16 %v1440
        %v1760 = vunpack.c.l.b16 %v1441
        %v1761 = vunpack.c.h.b16 %v1441
        %v1762 = vunpack.c.l.b16 %v1442
        %v1763 = vunpack.c.h.b16 %v1442
        %v1764 = vunpack.c.l.b16 %v1443
        %v1765 = vunpack.c.h.b16 %v1443
        %v1766 = vunpack.c.l.b16 %v1444
        %v1767 = vunpack.c.h.b16 %v1444
        %v1768 = vunpack.c.l.b16 %v1445
        %v1769 = vunpack.c.h.b16 %v1445
        %v1770 = vunpack.c.l.b16 %v1446
        %v1771 = vunpack.c.h.b16 %v1446
        %v1772 = vunpack.c.l.b16 %v1447
        %v1773 = vunpack.c.h.b16 %v1447
        %v1774 = vunpack.c.l.b16 %v1448
        %v1775 = vunpack.c.h.b16 %v1448
        %v1776 = vunpack.c.l.b16 %v1449
        %v1777 = vunpack.c.h.b16 %v1449
        %v1778 = vunpack.c.l.b16 %v1450
        %v1779 = vunpack.c.h.b16 %v1450
        %v1780 = vunpack.c.l.b16 %v1451
        %v1781 = vunpack.c.h.b16 %v1451
        %v1782 = vunpack.c.l.b16 %v1452
        %v1783 = vunpack.c.h.b16 %v1452
        %v1784 = vunpack.c.l.b16 %v1453
        %v1785 = vunpack.c.h.b16 %v1453
        %v1786 = vunpack.c.l.b16 %v1454
        %v1787 = vunpack.c.h.b16 %v1454
        %v1788 = vunpack.c.l.b16 %v1455
        %v1789 = vunpack.c.h.b16 %v1455
        %v1790 = vunpack.c.l.b16 %v1456
        %v1791 = vunpack.c.h.b16 %v1456
        %v1792 = vunpack.c.l.b16 %v1457
        %v1793 = vunpack.c.h.b16 %v1457
        %v1794 = vunpack.c.l.b16 %v1458
        %v1795 = vunpack.c.h.b16 %v1458
        %v1796 = vunpack.c.l.b16 %v1459
        %v1797 = vunpack.c.h.b16 %v1459
        %v1798 = vunpack.c.l.b16 %v1460
        %v1799 = vunpack.c.h.b16 %v1460
        %v1800 = vunpack.c.l.b16 %v1461
        %v1801 = vunpack.c.h.b16 %v1461
        %v1802 = vunpack.c.l.b16 %v1462
        %v1803 = vunpack.c.h.b16 %v1462
        %v1804 = vunpack.c.l.b16 %v1463
        %v1805 = vunpack.c.h.b16 %v1463
        %v1806 = vunpack.c.l.b16 %v1464
        %v1807 = vunpack.c.h.b16 %v1464
        %v1808 = vunpack.c.l.b16 %v1465
        %v1809 = vunpack.c.h.b16 %v1465
        %v1810 = vunpack.c.l.b16 %v1466
        %v1811 = vunpack.c.h.b16 %v1466
        %v1812 = vunpack.c.l.b16 %v1467
        %v1813 = vunpack.c.h.b16 %v1467
        %v1814 = vunpack.c.l.b16 %v1468
        %v1815 = vunpack.c.h.b16 %v1468
        %v1816 = vunpack.c.l.b16 %v1469
        %v1817 = vunpack.c.h.b16 %v1469
        %v1818 = vunpack.c.l.b16 %v1470
        %v1819 = vunpack.c.h.b16 %v1470
        %v1820 = vunpack.c.l.b16 %v1471
        %v1821 = vunpack.c.h.b16 %v1471
        %v1822 = vunpack.c.l.b16 %v1472
        %v1823 = vunpack.c.h.b16 %v1472
        %v1824 = vunpack.c.l.b16 %v1473
        %v1825 = vunpack.c.h.b16 %v1473
        %v1826 = vunpack.c.l.b16 %v1474
        %v1827 = vunpack.c.h.b16 %v1474
        %v1828 = vunpack.c.l.b16 %v1475
        %v1829 = vunpack.c.h.b16 %v1475
        %v1830 = vunpack.c.l.b16 %v1476
        %v1831 = vunpack.c.h.b16 %v1476
        %v1832 = vunpack.c.l.b16 %v1477
        %v1833 = vunpack.c.h.b16 %v1477
        %v1834 = vunpack.c.l.b16 %v1478
        %v1835 = vunpack.c.h.b16 %v1478
        %v1836 = vunpack.c.l.b16 %v1479
        %v1837 = vunpack.c.h.b16 %v1479
        %v1838 = vunpack.c.l.b16 %v1480
        %v1839 = vunpack.c.h.b16 %v1480
        %v1840 = vunpack.c.l.b16 %v1481
        %v1841 = vunpack.c.h.b16 %v1481
        %v1842 = vunpack.c.l.b16 %v1482
        %v1843 = vunpack.c.h.b16 %v1482
        %v1844 = vunpack.c.l.b16 %v1483
        %v1845 = vunpack.c.h.b16 %v1483
        %v1846 = vunpack.c.l.b16 %v1484
        %v1847 = vunpack.c.h.b16 %v1484
        %v1848 = vunpack.c.l.b16 %v1485
        %v1849 = vunpack.c.h.b16 %v1485
        %v1850 = vunpack.c.l.b16 %v1486
        %v1851 = vunpack.c.h.b16 %v1486
        %v1852 = vunpack.c.l.b16 %v1487
        %v1853 = vunpack.c.h.b16 %v1487
        %v1854 = vunpack.c.l.b16 %v1488
        %v1855 = vunpack.c.h.b16 %v1488
        %v1856 = vunpack.c.l.b16 %v1489
        %v1857 = vunpack.c.h.b16 %v1489
        %v1858 = vunpack.c.l.b16 %v1490
        %v1859 = vunpack.c.h.b16 %v1490
        %v1860 = vunpack.c.l.b16 %v1491
        %v1861 = vunpack.c.h.b16 %v1491
        %v1862 = vunpack.c.l.b16 %v1492
        %v1863 = vunpack.c.h.b16 %v1492
        %v1864 = vunpack.c.l.b16 %v1493
        %v1865 = vunpack.c.h.b16 %v1493
        %v1866 = vunpack.c.l.b16 %v1494
        %v1867 = vunpack.c.h.b16 %v1494
        %v1868 = vunpack.c.l.b16 %v1495
        %v1869 = vunpack.c.h.b16 %v1495
        %v1870 = vunpack.c.l.b16 %v1496
        %v1871 = vunpack.c.h.b16 %v1496
        %v1872 = vunpack.c.l.b16 %v1497
        %v1873 = vunpack.c.h.b16 %v1497
        %v1874 = vunpack.c.l.b16 %v1498
        %v1875 = vunpack.c.h.b16 %v1498
        %v1876 = vunpack.c.l.b16 %v1499
        %v1877 = vunpack.c.h.b16 %v1499
        %v1878 = vunpack.c.l.b16 %v1500
        %v1879 = vunpack.c.h.b16 %v1500
        %v1880 = vunpack.c.l.b16 %v1501
        %v1881 = vunpack.c.h.b16 %v1501
        %v1882 = vunpack.c.l.b16 %v1502
        %v1883 = vunpack.c.h.b16 %v1502
        %v1884 = vunpack.c.l.b16 %v1503
        %v1885 = vunpack.c.h.b16 %v1503
        %v1886 = vunpack.c.l.b16 %v1504
        %v1887 = vunpack.c.h.b16 %v1504
        %v1888 = vunpack.c.l.b16 %v1505
        %v1889 = vunpack.c.h.b16 %v1505
        %v1890 = vpack.c.b16 %v1638, %v1634
        %v1891 = vpack.c.b16 %v1639, %v1635
        %v1892 = vpack.c.b16 %v1640, %v1636
        %v1893 = vpack.c.b16 %v1641, %v1637
        %v1894 = vpack.c.b16 %v1646, %v1642
        %v1895 = vpack.c.b16 %v1647, %v1643
        %v1896 = vpack.c.b16 %v1648, %v1644
        %v1897 = vpack.c.b16 %v1649, %v1645
        %v1898 = vpack.c.b16 %v1654, %v1650
        %v1899 = vpack.c.b16 %v1655, %v1651
        %v1900 = vpack.c.b16 %v1656, %v1652
        %v1901 = vpack.c.b16 %v1657, %v1653
        %v1902 = vpack.c.b16 %v1662, %v1658
        %v1903 = vpack.c.b16 %v1663, %v1659
        %v1904 = vpack.c.b16 %v1664, %v1660
        %v1905 = vpack.c.b16 %v1665, %v1661
        %v1906 = vpack.c.b16 %v1670, %v1666
        %v1907 = vpack.c.b16 %v1671, %v1667
        %v1908 = vpack.c.b16 %v1672, %v1668
        %v1909 = vpack.c.b16 %v1673, %v1669
        %v1910 = vpack.c.b16 %v1678, %v1674
        %v1911 = vpack.c.b16 %v1679, %v1675
        %v1912 = vpack.c.b16 %v1680, %v1676
        %v1913 = vpack.c.b16 %v1681, %v1677
        %v1914 = vpack.c.b16 %v1686, %v1682
        %v1915 = vpack.c.b16 %v1687, %v1683
        %v1916 = vpack.c.b16 %v1688, %v1684
        %v1917 = vpack.c.b16 %v1689, %v1685
        %v1918 = vpack.c.b16 %v1694, %v1690
        %v1919 = vpack.c.b16 %v1695, %v1691
        %v1920 = vpack.c.b16 %v1696, %v1692
        %v1921 = vpack.c.b16 %v1697, %v1693
        %v1922 = vpack.c.b16 %v1702, %v1698
        %v1923 = vpack.c.b16 %v1703, %v1699
        %v1924 = vpack.c.b16 %v1704, %v1700
        %v1925 = vpack.c.b16 %v1705, %v1701
        %v1926 = vpack.c.b16 %v1710, %v1706
        %v1927 = vpack.c.b16 %v1711, %v1707
        %v1928 = vpack.c.b16 %v1712, %v1708
        %v1929 = vpack.c.b16 %v1713, %v1709
        %v1930 = vpack.c.b16 %v1718, %v1714
        %v1931 = vpack.c.b16 %v1719, %v1715
        %v1932 = vpack.c.b16 %v1720, %v1716
        %v1933 = vpack.c.b16 %v1721, %v1717
        %v1934 = vpack.c.b16 %v1726, %v1722
        %v1935 = vpack.c.b16 %v1727, %v1723
        %v1936 = vpack.c.b16 %v1728, %v1724
        %v1937 = vpack.c.b16 %v1729, %v1725
        %v1938 = vpack.c.b16 %v1734, %v1730
        %v1939 = vpack.c.b16 %v1735, %v1731
        %v1940 = vpack.c.b16 %v1736, %v1732
        %v1941 = vpack.c.b16 %v1737, %v1733
        %v1942 = vpack.c.b16 %v1742, %v1738
        %v1943 = vpack.c.b16 %v1743, %v1739
        %v1944 = vpack.c.b16 %v1744, %v1740
        %v1945 = vpack.c.b16 %v1745, %v1741
        %v1946 = vpack.c.b16 %v1750, %v1746
        %v1947 = vpack.c.b16 %v1751, %v1747
        %v1948 = vpack.c.b16 %v1752, %v1748
        %v1949 = vpack.c.b16 %v1753, %v1749
        %v1950 = vpack.c.b16 %v1758, %v1754
        %v1951 = vpack.c.b16 %v1759, %v1755
        %v1952 = vpack.c.b16 %v1760, %v1756
        %v1953 = vpack.c.b16 %v1761, %v1757
        %v1954 = vpack.c.b16 %v1766, %v1762
        %v1955 = vpack.c.b16 %v1767, %v1763
        %v1956 = vpack.c.b16 %v1768, %v1764
        %v1957 = vpack.c.b16 %v1769, %v1765
        %v1958 = vpack.c.b16 %v1774, %v1770
        %v1959 = vpack.c.b16 %v1775, %v1771
        %v1960 = vpack.c.b16 %v1776, %v1772
        %v1961 = vpack.c.b16 %v1777, %v1773
        %v1962 = vpack.c.b16 %v1782, %v1778
        %v1963 = vpack.c.b16 %v1783, %v1779
        %v1964 = vpack.c.b16 %v1784, %v1780
        %v1965 = vpack.c.b16 %v1785, %v1781
        %v1966 = vpack.c.b16 %v1790, %v1786
        %v1967 = vpack.c.b16 %v1791, %v1787
        %v1968 = vpack.c.b16 %v1792, %v1788
        %v1969 = vpack.c.b16 %v1793, %v1789
        %v1970 = vpack.c.b16 %v1798, %v1794
        %v1971 = vpack.c.b16 %v1799, %v1795
        %v1972 = vpack.c.b16 %v1800, %v1796
        %v1973 = vpack.c.b16 %v1801, %v1797
        %v1974 = vpack.c.b16 %v1806, %v1802
        %v1975 = vpack.c.b16 %v1807, %v1803
        %v1976 = vpack.c.b16 %v1808, %v1804
        %v1977 = vpack.c.b16 %v1809, %v1805
        %v1978 = vpack.c.b16 %v1814, %v1810
        %v1979 = vpack.c.b16 %v1815, %v1811
        %v1980 = vpack.c.b16 %v1816, %v1812
        %v1981 = vpack.c.b16 %v1817, %v1813
        %v1982 = vpack.c.b16 %v1822, %v1818
        %v1983 = vpack.c.b16 %v1823, %v1819
        %v1984 = vpack.c.b16 %v1824, %v1820
        %v1985 = vpack.c.b16 %v1825, %v1821
        %v1986 = vpack.c.b16 %v1830, %v1826
        %v1987 = vpack.c.b16 %v1831, %v1827
        %v1988 = vpack.c.b16 %v1832, %v1828
        %v1989 = vpack.c.b16 %v1833, %v1829
        %v1990 = vpack.c.b16 %v1838, %v1834
        %v1991 = vpack.c.b16 %v1839, %v1835
        %v1992 = vpack.c.b16 %v1840, %v1836
        %v1993 = vpack.c.b16 %v1841, %v1837
        %v1994 = vpack.c.b16 %v1846, %v1842
        %v1995 = vpack.c.b16 %v1847, %v1843
        %v1996 = vpack.c.b16 %v1848, %v1844
        %v1997 = vpack.c.b16 %v1849, %v1845
        %v1998 = vpack.c.b16 %v1854, %v1850
        %v1999 = vpack.c.b16 %v1855, %v1851
        %v2000 = vpack.c.b16 %v1856, %v1852
        %v2001 = vpack.c.b16 %v1857, %v1853
        %v2002 = vpack.c.b16 %v1862, %v1858
        %v2003 = vpack.c.b16 %v1863, %v1859
        %v2004 = vpack.c.b16 %v1864, %v1860
        %v2005 = vpack.c.b16 %v1865, %v1861
        %v2006 = vpack.c.b16 %v1870, %v1866
        %v2007 = vpack.c.b16 %v1871, %v1867
        %v2008 = vpack.c.b16 %v1872, %v1868
        %v2009 = vpack.c.b16 %v1873, %v1869
        %v2010 = vpack.c.b16 %v1878, %v1874
        %v2011 = vpack.c.b16 %v1879, %v1875
        %v2012 = vpack.c.b16 %v1880, %v1876
        %v2013 = vpack.c.b16 %v1881, %v1877
        %v2014 = vpack.c.b16 %v1886, %v1882
        %v2015 = vpack.c.b16 %v1887, %v1883
        %v2016 = vpack.c.b16 %v1888, %v1884
        %v2017 = vpack.c.b16 %v1889, %v1885
        %2146 = vmatprep.subr.bf16.mxu0 %v1919
        %2147 = vmatpush1.bf16.msra.mxu0 %v1918
        %2148 = vmatprep.subr.bf16.mxu0 %v1915
        %2149 = vmatpush1.bf16.msra.mxu0 %v1914
        %2150 = vmatprep.subr.bf16.mxu0 %v1911
        %2151 = vmatpush1.bf16.msra.mxu0 %v1910
        %2152 = vmatprep.subr.bf16.mxu0 %v1907
        %2153 = vmatpush1.bf16.msra.mxu0 %v1906
        %2154 = vmatprep.subr.bf16.mxu0 %v1903
        %2155 = vmatpush1.bf16.msra.mxu0 %v1902
        %2156 = vmatprep.subr.bf16.mxu0 %v1899
        %2157 = vmatpush1.bf16.msra.mxu0 %v1898
        %2158 = vmatprep.subr.bf16.mxu0 %v1895
        %2159 = vmatpush1.bf16.msra.mxu0 %v1894
        %2160 = vmatprep.subr.bf16.mxu0 %v1891
        %2161 = vmatpush1.bf16.msra.mxu0 %v1890
        %2162 = vmatprep.subr.bf16.mxu0 %v1951
        %2163 = vmatpush2.bf16.msra.mxu0 %v1950
        %2164 = vmatprep.subr.bf16.mxu0 %v1947
        %2165 = vmatpush2.bf16.msra.mxu0 %v1946
        %2166 = vmatprep.subr.bf16.mxu0 %v1943
        %2167 = vmatpush2.bf16.msra.mxu0 %v1942
        %2168 = vmatprep.subr.bf16.mxu0 %v1939
        %2169 = vmatpush2.bf16.msra.mxu0 %v1938
        %2170 = vmatprep.subr.bf16.mxu0 %v1935
        %2171 = vmatpush2.bf16.msra.mxu0 %v1934
        %2172 = vmatprep.subr.bf16.mxu0 %v1931
        %2173 = vmatpush2.bf16.msra.mxu0 %v1930
        %2174 = vmatprep.subr.bf16.mxu0 %v1927
        %2175 = vmatpush2.bf16.msra.mxu0 %v1926
        %2176 = vmatprep.subr.bf16.mxu0 %v1923
        %2177 = vmatpush2.bf16.msra.mxu0 %v1922
        %2178 = vmatprep.mubr.bf16.mxu0 %v1375
        %2179 = vmatmul.mubr.bf16.gmra.mxu0 %v1374
        %v2180 = vpop.f32.mrf.mxu0
        %v2181 = vadd.f32 0.0, %v2180
        %v2182 = vpop.f32.mrf.mxu0
        %v2183 = vadd.f32 0.0, %v2182
        %v2184 = vpop.f32.mrf.mxu0
        %v2185 = vpop.f32.mrf.mxu0
        %2186 = vdwg.mxu0
        %2187 = vmatprep.subr.bf16.mxu0 %v1983
        %2188 = vmatpush1.bf16.msra.mxu0 %v1982
        %2189 = vmatprep.subr.bf16.mxu0 %v1979
        %2190 = vmatpush1.bf16.msra.mxu0 %v1978
        %2191 = vmatprep.subr.bf16.mxu0 %v1975
        %2192 = vmatpush1.bf16.msra.mxu0 %v1974
        %2193 = vmatprep.subr.bf16.mxu0 %v1971
        %2194 = vmatpush1.bf16.msra.mxu0 %v1970
        %2195 = vmatprep.subr.bf16.mxu0 %v1967
        %2196 = vmatpush1.bf16.msra.mxu0 %v1966
        %2197 = vmatprep.subr.bf16.mxu0 %v1963
        %2198 = vmatpush1.bf16.msra.mxu0 %v1962
        %2199 = vmatprep.subr.bf16.mxu0 %v1959
        %2200 = vmatpush1.bf16.msra.mxu0 %v1958
        %2201 = vmatprep.subr.bf16.mxu0 %v1955
        %2202 = vmatpush1.bf16.msra.mxu0 %v1954
        %2203 = vmatprep.subr.bf16.mxu0 %v2015
        %2204 = vmatpush2.bf16.msra.mxu0 %v2014
        %2205 = vmatprep.subr.bf16.mxu0 %v2011
        %2206 = vmatpush2.bf16.msra.mxu0 %v2010
        %2207 = vmatprep.subr.bf16.mxu0 %v2007
        %2208 = vmatpush2.bf16.msra.mxu0 %v2006
        %2209 = vmatprep.subr.bf16.mxu0 %v2003
        %2210 = vmatpush2.bf16.msra.mxu0 %v2002
        %2211 = vmatprep.subr.bf16.mxu0 %v1999
        %2212 = vmatpush2.bf16.msra.mxu0 %v1998
        %2213 = vmatprep.subr.bf16.mxu0 %v1995
        %2214 = vmatpush2.bf16.msra.mxu0 %v1994
        %2215 = vmatprep.subr.bf16.mxu0 %v1991
        %2216 = vmatpush2.bf16.msra.mxu0 %v1990
        %2217 = vmatprep.subr.bf16.mxu0 %v1987
        %2218 = vmatpush2.bf16.msra.mxu0 %v1986
        %2219 = vmatprep.mubr.bf16.mxu0 %v1377
        %2220 = vmatmul.mubr.bf16.gmra.mxu0 %v1376
        %v2221 = vpop.f32.mrf.mxu0
        %v2222 = vadd.f32 %v2181, %v2221
        %v2223 = vpop.f32.mrf.mxu0
        %v2224 = vadd.f32 %v2183, %v2223
        %v2225 = vpop.f32.mrf.mxu0
        %v2226 = vpop.f32.mrf.mxu0
        %2227 = vdwg.mxu0
        %2228 = vmatprep.subr.bf16.mxu0 %v1921
        %2229 = vmatpush1.bf16.msra.mxu0 %v1920
        %2230 = vmatprep.subr.bf16.mxu0 %v1917
        %2231 = vmatpush1.bf16.msra.mxu0 %v1916
        %2232 = vmatprep.subr.bf16.mxu0 %v1913
        %2233 = vmatpush1.bf16.msra.mxu0 %v1912
        %2234 = vmatprep.subr.bf16.mxu0 %v1909
        %2235 = vmatpush1.bf16.msra.mxu0 %v1908
        %2236 = vmatprep.subr.bf16.mxu0 %v1905
        %2237 = vmatpush1.bf16.msra.mxu0 %v1904
        %2238 = vmatprep.subr.bf16.mxu0 %v1901
        %2239 = vmatpush1.bf16.msra.mxu0 %v1900
        %2240 = vmatprep.subr.bf16.mxu0 %v1897
        %2241 = vmatpush1.bf16.msra.mxu0 %v1896
        %2242 = vmatprep.subr.bf16.mxu0 %v1893
        %2243 = vmatpush1.bf16.msra.mxu0 %v1892
        %2244 = vmatprep.subr.bf16.mxu0 %v1953
        %2245 = vmatpush2.bf16.msra.mxu0 %v1952
        %2246 = vmatprep.subr.bf16.mxu0 %v1949
        %2247 = vmatpush2.bf16.msra.mxu0 %v1948
        %2248 = vmatprep.subr.bf16.mxu0 %v1945
        %2249 = vmatpush2.bf16.msra.mxu0 %v1944
        %2250 = vmatprep.subr.bf16.mxu0 %v1941
        %2251 = vmatpush2.bf16.msra.mxu0 %v1940
        %2252 = vmatprep.subr.bf16.mxu0 %v1937
        %2253 = vmatpush2.bf16.msra.mxu0 %v1936
        %2254 = vmatprep.subr.bf16.mxu0 %v1933
        %2255 = vmatpush2.bf16.msra.mxu0 %v1932
        %2256 = vmatprep.subr.bf16.mxu0 %v1929
        %2257 = vmatpush2.bf16.msra.mxu0 %v1928
        %2258 = vmatprep.subr.bf16.mxu0 %v1925
        %2259 = vmatpush2.bf16.msra.mxu0 %v1924
        %2260 = vmatprep.mubr.bf16.mxu0 %v1375
        %2261 = vmatmul.mubr.bf16.gmra.mxu0 %v1374
        %v2262 = vpop.f32.mrf.mxu0
        %v2263 = vadd.f32 0.0, %v2262
        %v2264 = vpop.f32.mrf.mxu0
        %v2265 = vadd.f32 0.0, %v2264
        %v2266 = vpop.f32.mrf.mxu0
        %v2267 = vpop.f32.mrf.mxu0
        %2268 = vdwg.mxu0
        %2269 = vmatprep.subr.bf16.mxu0 %v1985
        %2270 = vmatpush1.bf16.msra.mxu0 %v1984
        %2271 = vmatprep.subr.bf16.mxu0 %v1981
        %2272 = vmatpush1.bf16.msra.mxu0 %v1980
        %2273 = vmatprep.subr.bf16.mxu0 %v1977
        %2274 = vmatpush1.bf16.msra.mxu0 %v1976
        %2275 = vmatprep.subr.bf16.mxu0 %v1973
        %2276 = vmatpush1.bf16.msra.mxu0 %v1972
        %2277 = vmatprep.subr.bf16.mxu0 %v1969
        %2278 = vmatpush1.bf16.msra.mxu0 %v1968
        %2279 = vmatprep.subr.bf16.mxu0 %v1965
        %2280 = vmatpush1.bf16.msra.mxu0 %v1964
        %2281 = vmatprep.subr.bf16.mxu0 %v1961
        %2282 = vmatpush1.bf16.msra.mxu0 %v1960
        %2283 = vmatprep.subr.bf16.mxu0 %v1957
        %2284 = vmatpush1.bf16.msra.mxu0 %v1956
        %2285 = vmatprep.subr.bf16.mxu0 %v2017
        %2286 = vmatpush2.bf16.msra.mxu0 %v2016
        %2287 = vmatprep.subr.bf16.mxu0 %v2013
        %2288 = vmatpush2.bf16.msra.mxu0 %v2012
        %2289 = vmatprep.subr.bf16.mxu0 %v2009
        %2290 = vmatpush2.bf16.msra.mxu0 %v2008
        %2291 = vmatprep.subr.bf16.mxu0 %v2005
        %2292 = vmatpush2.bf16.msra.mxu0 %v2004
        %2293 = vmatprep.subr.bf16.mxu0 %v2001
        %2294 = vmatpush2.bf16.msra.mxu0 %v2000
        %2295 = vmatprep.subr.bf16.mxu0 %v1997
        %2296 = vmatpush2.bf16.msra.mxu0 %v1996
        %2297 = vmatprep.subr.bf16.mxu0 %v1993
        %2298 = vmatpush2.bf16.msra.mxu0 %v1992
        %2299 = vmatprep.subr.bf16.mxu0 %v1989
        %2300 = vmatpush2.bf16.msra.mxu0 %v1988
        %2301 = vmatprep.mubr.bf16.mxu0 %v1377
        %2302 = vmatmul.mubr.bf16.gmra.mxu0 %v1376
        %v2303 = vpop.f32.mrf.mxu0
        %v2304 = vadd.f32 %v2263, %v2303
        %v2305 = vpop.f32.mrf.mxu0
        %v2306 = vadd.f32 %v2265, %v2305
        %v2307 = vpop.f32.mrf.mxu0
        %v2308 = vpop.f32.mrf.mxu0
        %2309 = vdwg.mxu0
        %v2310 = vadd.f32 %v1370, %v2222
        %v2311 = vadd.f32 %v1371, %v2224
        %v2312 = vadd.f32 %v1372, %v2304
        %v2313 = vadd.f32 %v1373, %v2306
        %2314 = vst [vmem:[#allocation2] sm:$0xff] %v2310
        %2315 = vst [vmem:[#allocation2 + $0x8] sm:$0xff] %v2311
        %2316 = vst [vmem:[#allocation2 + $0x10] sm:$0xff] %v2312
        %2317 = vst [vmem:[#allocation2 + $0x18] sm:$0xff] %v2313
        %p2318 = scmp.eq.s32.totalorder %s33, 1
        // Predicated region
        $region61: #{tpu_custom_call.1} parent=39 // pred_check
          %p2319 = pneg %p2318
        $region62: #{tpu_custom_call.1} parent=39 // pred_check_branch
          %2321 = sbr.rel (%p2319) target = $region64
        $region63: #{tpu_custom_call.1} parent=39 // pred_region
          %v2322 = vld [vmem:[#allocation2] sm:$0xff]
          %v2323 = vld [vmem:[#allocation2 + $0x8] sm:$0xff]
          %v2324 = vld [vmem:[#allocation2 + $0x10] sm:$0xff]
          %v2325 = vld [vmem:[#allocation2 + $0x18] sm:$0xff]
          %v2326 = vld [vmem:[%s4] sm:$0xf]
          %v2328 = vlaneseq
          %v2329 = vshrl.u32 %v2328, 7
          %v2330 = vsub.s32 0, %v2329
          %v2331 = vrot.slane %v2326, %v2330
          %v2332 = vlaneseq
          %v2333 = vshrl.u32 %v2332, 7
          %v2334 = vsub.s32 1, %v2333
          %v2335 = vrot.slane %v2326, %v2334
          %v2336 = vlaneseq
          %v2337 = vshrl.u32 %v2336, 7
          %v2338 = vsub.s32 2, %v2337
          %v2339 = vrot.slane %v2326, %v2338
          %v2340 = vlaneseq
          %v2341 = vshrl.u32 %v2340, 7
          %v2342 = vsub.s32 3, %v2341
          %v2343 = vrot.slane %v2326, %v2342
          %v2348 = vadd.f32 %v2322, %v2331
          %v2349 = vadd.f32 %v2323, %v2335
          %v2350 = vadd.f32 %v2324, %v2339
          %v2351 = vadd.f32 %v2325, %v2343
          %2352 = vst [vmem:[%s368] sm:$0xff] %v2348
          %2353 = vst [vmem:[%s368 + $0x8] sm:$0xff] %v2349
          %2354 = vst [vmem:[%s368 + $0x10] sm:$0xff] %v2350
          %2355 = vst [vmem:[%s368 + $0x18] sm:$0xff] %v2351
        $region64: #{tpu_custom_call.1} parent=39 // pred_fallthru
          _
        %s2356 = sand.u32 %s173, 1
        %s2357 = scalar_lea.sflag [#allocation5], %s2356
        %s2358 = sand.u32 %s173, 1
        %s2359 = smul.addr %s2358, 32
        %s2360 = scalar_lea.vmem [#allocation11], %s2359
        // Predicated region
        $region65: #{tpu_custom_call.1} parent=39 // pred_check
          %p2361 = pneg %p183
        $region66: #{tpu_custom_call.1} parent=39 // pred_check_branch
          %2363 = sbr.rel (%p2361) target = $region68
        $region67: #{tpu_custom_call.1} parent=39 // pred_region
          %s2365 = ssub.s32 512, 512
          %2366 = vsyncadd %s2357, %s2365
          %s2367 = smul.addr %s32, 4
          %s2368 = smul.addr %s2367, 128
          %s2369 = scalar_lea.hbm %s5, %s2368
          %s2371 = sshll.u32 %s2360, 4
          %s2372 = int_to_ptr.vmem [resolvable:$true] %s2371
          %2374 = dma.vmem_to_hbm [thread:$0]  %s2372, 512, %s2369, %s2357
        $region68: #{tpu_custom_call.1} parent=39 // pred_fallthru
          _
      $region40: #{tpu_custom_call.1} parent=5 // pred_fallthru
        _
      %p2375 = scmp.le.s32.totalorder 2, %s23
      // Predicated region
      $region69: #{tpu_custom_call.1} parent=5 // pred_check
        %p2376 = pneg %p2375
      $region70: #{tpu_custom_call.1} parent=5 // pred_check_branch
        %2378 = sbr.rel (%p2376) target = $region72
      $region71: #{tpu_custom_call.1} parent=5 // pred_region
        %s2379 = ssub.s32 %s23, 2
        // Predicated region
        $region73: #{tpu_custom_call.1} parent=71 // pred_check
          %p2380 = pneg %p189
        $region74: #{tpu_custom_call.1} parent=71 // pred_check_branch
          %2382 = sbr.rel (%p2380) target = $region76
        $region75: #{tpu_custom_call.1} parent=71 // pred_region
          %s2383 = sand.u32 %s174, 1
          %s2384 = scalar_lea.sflag [#allocation5], %s2383
          %s2385 = sand.u32 %s174, 1
          %s2386 = smul.addr %s2385, 32
          %s2387 = scalar_lea.vmem [#allocation11], %s2386
          %2388 = dma.done %s2384, 512
        $region76: #{tpu_custom_call.1} parent=71 // pred_fallthru
          _
      $region72: #{tpu_custom_call.1} parent=5 // pred_fallthru
        _
    $region6: #{tpu_custom_call.1} parent=1 // loop_footer
      %s27 = sadd.s32 1, %s23
    $region7: #{tpu_custom_call.1} parent=1 // loop_footer_branch
      %22 = sbr.rel target = $region3
    $region8: #{tpu_custom_call.1} parent=1 // loop_exit
      _
    %2389 = vsyncpa [#allocation4], 1
    %s2390 = scalar_lea.sflag [#allocation4], 1
    %2391 = vsyncpa %s2390, 1
    %2392 = vsyncpa [#allocation7], 1
    %s2393 = scalar_lea.sflag [#allocation7], 1
    %2394 = vsyncpa %s2393, 1
    %2395 = vsyncpa [#allocation10], 1
    %s2396 = scalar_lea.sflag [#allocation10], 1
    %2397 = vsyncpa %s2396, 1
    %2398 = vsyncpa [#allocation5], 1
    %s2399 = scalar_lea.sflag [#allocation5], 1
    %2400 = vsyncpa %s2399, 1

</llo_original>
